<compile_context>
chip_gen: v7x
topology: tpu7x:2x2x1
jax: 0.10.0
libtpu: 0.0.40
codegen_flags: <defaults>
</compile_context>

<pallas_src>
import jax
import jax.numpy as jnp
from jax.experimental import pallas as pl
from jax.experimental.pallas import tpu as pltpu

GROUPS = 32
EPS = 1e-5


def _silu(x):
    return x * jax.nn.sigmoid(x)


def _group_norm(x2, mg_scaled, gamma, beta):
    """GroupNorm over a (N, C) slab of one image (N = H*W spatial positions).

    mg_scaled: (C, C) f32 precomputed group-membership matrix with the
               1/(N*group_size) normalization folded in.
    """
    s1 = jnp.sum(x2, axis=0, keepdims=True)                 # (1, C)
    s2 = jnp.sum(x2 * x2, axis=0, keepdims=True)            # (1, C)
    stats = jnp.dot(jnp.concatenate([s1, s2], axis=0), mg_scaled,
                    preferred_element_type=jnp.float32)      # (2, C): mean, E[x^2]
    mean = stats[0:1]
    var = jnp.maximum(stats[1:2] - mean * mean, 0.0)         # guard tiny negatives
    inv = jax.lax.rsqrt(var + EPS)
    return (x2 - mean) * (inv * gamma) + beta


def _conv3x3(pad_ref, w_ref, bias, H, W, Cout):
    """3x3 'same' conv as 3 K-packed f32 MXU matmuls with f32 accumulation.

    pad_ref: (H+2, W+2, Cin) f32 zero-halo activation scratch.
    w_ref  : (3, 3*Cin, Cout) f32 weights (dy major, [dx | cin] on the K axis).
    bias   : (1, Cout) f32.
    """
    Cin = pad_ref.shape[-1]
    # im2col along the kernel-width axis, built once per conv:
    #   shifted[r, c, dx*Cin + ci] = pad[r, c + dx, ci]
    shifted = jnp.concatenate(
        [pad_ref[:, dx:dx + W, :] for dx in range(3)], axis=-1)   # (H+2, W, 3*Cin)
    acc = jnp.broadcast_to(bias, (H * W, Cout)).astype(jnp.float32)
    for dy in range(3):                                           # 3 matmuls, K = 3*Cin
        patch = shifted[dy:dy + H].reshape(H * W, 3 * Cin)        # leading-dim slice
        acc = acc + jnp.dot(patch, w_ref[dy],
                            preferred_element_type=jnp.float32)
    return acc


def _store_padded(pad_ref, h, H, W):
    """Write the f32 interior and zero only the 1-pixel halo (not the full buffer)."""
    C = pad_ref.shape[-1]
    pad_ref[1:H + 1, 1:W + 1, :] = h.reshape(H, W, C).astype(pad_ref.dtype)
    zrow = jnp.zeros((1, W + 2, C), pad_ref.dtype)
    zcol = jnp.zeros((H, 1, C), pad_ref.dtype)
    pad_ref[0:1, :, :] = zrow
    pad_ref[H + 1:H + 2, :, :] = zrow
    pad_ref[1:H + 1, 0:1, :] = zcol
    pad_ref[1:H + 1, W + 1:W + 2, :] = zcol


def residual_block_kernel(
        x_ref, e_ref,
        mg1_ref, gn1w_ref, gn1b_ref, w1_ref, b1_ref,
        ew_ref, eb_ref,
        mg2_ref, gn2w_ref, gn2b_ref, w2_ref, b2_ref,
        wsc_ref, bsc_ref,
        o_ref,
        pad1_ref, pad2_ref):
    _, H, W, Cin = x_ref.shape
    Cout = o_ref.shape[3]

    x = x_ref[0].astype(jnp.float32)                          # (H, W, Cin)
    x2 = x.reshape(H * W, Cin)

    # ---- layer1: GroupNorm(32) -> SiLU -> Conv3x3 (padding=1) ----
    h = _silu(_group_norm(x2, mg1_ref[...], gn1w_ref[...], gn1b_ref[...]))
    _store_padded(pad1_ref, h, H, W)
    h = _conv3x3(pad1_ref, w1_ref, b1_ref[...], H, W, Cout)   # (H*W, Cout) f32

    # ---- embedding: SiLU -> Linear(E, 2*Cout); chunk -> (scale, shift) ----
    e = e_ref[0].astype(jnp.float32)                          # (1, E)
    emb = jnp.dot(_silu(e), ew_ref[...],
                  preferred_element_type=jnp.float32) + eb_ref[...]
    scale = emb[:, :Cout]
    shift = emb[:, Cout:]

    # ---- layer2: GN * (1+scale) + shift -> SiLU -> Dropout(p=0) -> Conv3x3 ----
    h = _group_norm(h, mg2_ref[...], gn2w_ref[...], gn2b_ref[...])
    h = _silu(h * (1.0 + scale) + shift)
    _store_padded(pad2_ref, h, H, W)
    h = _conv3x3(pad2_ref, w2_ref, b2_ref[...], H, W, Cout)

    # ---- shortcut (1x1 conv since in_dim != out_dim) + residual ----
    sc = jnp.dot(x2, wsc_ref[...],
                 preferred_element_type=jnp.float32) + bsc_ref[...]
    o_ref[0] = (h + sc).reshape(H, W, Cout).astype(o_ref.dtype)


def _group_mask(C, n_spatial):
    gsize = C // GROUPS
    gid = jnp.arange(C, dtype=jnp.int32) // gsize
    m = (gid[:, None] == gid[None, :]).astype(jnp.float32)
    return m / jnp.float32(n_spatial * gsize)


def residual_block_forward(x_nchw, e, params):
    B, Cin, H, W = x_nchw.shape
    Cout = params['b1'].shape[-1]
    E = e.shape[1]

    x_nhwc = jnp.transpose(x_nchw, (0, 2, 3, 1))              # NCHW -> NHWC
    e3 = e.reshape(B, 1, E)

    # f32 MXU operands (portable: f32 x f32 -> f32 runs on TPU and interpret/CPU).
    w1 = params['conv1_w'].reshape(3, 3 * Cin, Cout).astype(jnp.float32)
    w2 = params['conv2_w'].reshape(3, 3 * Cout, Cout).astype(jnp.float32)
    wsc = params['sc_w'].astype(jnp.float32)

    # Precomputed group-membership matrices (constant index_map -> DMA'd once).
    mg1 = _group_mask(Cin, H * W)
    mg2 = _group_mask(Cout, H * W)

    def full(shape):
        return pl.BlockSpec(shape, lambda b, _n=len(shape): (0,) * _n)

    grid_spec = pltpu.PrefetchScalarGridSpec(
        num_scalar_prefetch=0,
        grid=(B,),
        in_specs=[
            pl.BlockSpec((1, H, W, Cin), lambda b: (b, 0, 0, 0)),   # x
            pl.BlockSpec((1, 1, E), lambda b: (b, 0, 0)),           # e
            full((Cin, Cin)), full((1, Cin)), full((1, Cin)),       # mg1, gn1 w/b
            full((3, 3 * Cin, Cout)), full((1, Cout)),              # conv1 w, b
            full((E, 2 * Cout)), full((1, 2 * Cout)),               # emb w, b
            full((Cout, Cout)), full((1, Cout)), full((1, Cout)),   # mg2, gn2 w/b
            full((3, 3 * Cout, Cout)), full((1, Cout)),             # conv2 w, b
            full((Cin, Cout)), full((1, Cout)),                     # shortcut w, b
        ],
        out_specs=pl.BlockSpec((1, H, W, Cout), lambda b: (b, 0, 0, 0)),
        scratch_shapes=[
            pltpu.VMEM((H + 2, W + 2, Cin), jnp.float32),
            pltpu.VMEM((H + 2, W + 2, Cout), jnp.float32),
        ],
    )

    flops = (2 * B * H * W * (9 * Cin * Cout + 9 * Cout * Cout + Cin * Cout)
             + 2 * B * E * 2 * Cout)
    transcendentals = B * (H * W * (Cin + Cout) + E)
    bytes_accessed = (4 * (x_nchw.size + B * H * W * Cout)
                      + 4 * (w1.size + w2.size + wsc.size)
                      + 4 * (mg1.size + mg2.size + params['emb_w'].size)
                      + 4 * sum(params[k].size for k in
                                ('gn1_w', 'gn1_b', 'b1', 'emb_b',
                                 'gn2_w', 'gn2_b', 'b2', 'sc_b')))

    out_nhwc = pl.pallas_call(
        residual_block_kernel,
        out_shape=jax.ShapeDtypeStruct((B, H, W, Cout), x_nchw.dtype),
        grid_spec=grid_spec,
        compiler_params=pltpu.CompilerParams(
            dimension_semantics=("parallel",),          # batch elems independent
            vmem_limit_bytes=48 * 1024 * 1024,          # headroom under v7x 64 MiB
        ),
        cost_estimate=pl.CostEstimate(
            flops=flops, transcendentals=transcendentals,
            bytes_accessed=bytes_accessed),
    )(x_nhwc, e3,
      mg1, params['gn1_w'], params['gn1_b'], w1, params['b1'],
      params['emb_w'], params['emb_b'],
      mg2, params['gn2_w'], params['gn2_b'], w2, params['b2'],
      wsc, params['sc_b'])

    return jnp.transpose(out_nhwc, (0, 3, 1, 2))              # NHWC -> NCHW


# ----------------------- pure-JAX reference (NCHW, f32) -----------------------
def _ref_group_norm(x, g, b, groups):
    B, C, H, W = x.shape
    xr = x.reshape(B, groups, -1)
    m = xr.mean(axis=2, keepdims=True)
    v = ((xr - m) ** 2).mean(axis=2, keepdims=True)
    xr = (xr - m) / jnp.sqrt(v + EPS)
    x = xr.reshape(B, C, H, W)
    return x * g.reshape(1, C, 1, 1) + b.reshape(1, C, 1, 1)


def _ref_conv3x3(x, w9, bias):
    ci, co = w9.shape[1], w9.shape[2]
    w = w9.reshape(3, 3, ci, co)                              # HWIO
    y = jax.lax.conv_general_dilated(
        x, w, (1, 1), ((1, 1), (1, 1)),
        dimension_numbers=('NCHW', 'HWIO', 'NCHW'),
        preferred_element_type=jnp.float32)
    return y + bias.reshape(1, co, 1, 1)


def reference_forward(x, e, p):
    """Module-faithful f32 reference (default ResidualBlock path)."""
    Cout = p['b1'].shape[-1]
    h = _ref_conv3x3(_silu(_ref_group_norm(x, p['gn1_w'], p['gn1_b'], GROUPS)),
                     p['conv1_w'], p['b1'])
    emb = _silu(e) @ p['emb_w'] + p['emb_b']
    scale = emb[:, :Cout][:, :, None, None]
    shift = emb[:, Cout:][:, :, None, None]
    h = _ref_group_norm(h, p['gn2_w'], p['gn2_b'], GROUPS) * (1.0 + scale) + shift
    h = _ref_conv3x3(_silu(h), p['conv2_w'], p['b2'])
    sc = jnp.einsum('bchw,cd->bdhw', x, p['sc_w'],
                    preferred_element_type=jnp.float32)
    return h + sc + p['sc_b'].reshape(1, Cout, 1, 1)


if __name__ == "__main__":
    B, Cin, Cout, E, H, W = 2, 32, 64, 48, 8, 8
    keys = jax.random.split(jax.random.PRNGKey(0), 16)

    def rnd(k, shape, scale=0.1):
        return jax.random.normal(k, shape, jnp.float32) * scale

    params = {
        'gn1_w': 1.0 + rnd(keys[0], (1, Cin)),
        'gn1_b': rnd(keys[1], (1, Cin)),
        'conv1_w': rnd(keys[2], (9, Cin, Cout)),
        'b1': rnd(keys[3], (1, Cout)),
        'emb_w': rnd(keys[4], (E, 2 * Cout)),
        'emb_b': rnd(keys[5], (1, 2 * Cout)),
        'gn2_w': 1.0 + rnd(keys[6], (1, Cout)),
        'gn2_b': rnd(keys[7], (1, Cout)),
        'conv2_w': jnp.zeros((9, Cout, Cout), jnp.float32),   # nn.init.zeros_
        'b2': rnd(keys[8], (1, Cout)),
        'sc_w': rnd(keys[9], (Cin, Cout)),
        'sc_b': rnd(keys[10], (1, Cout)),
    }
    x = jax.random.normal(keys[11], (B, Cin, H, W), jnp.float32)
    e = jax.random.normal(keys[12], (B, E), jnp.float32)

    def check(p, tag):
        out = residual_block_forward(x, e, p)
        ref = reference_forward(x, e, p)
        err = float(jnp.max(jnp.abs(out - ref)))
        assert jnp.allclose(out, ref, atol=2e-3, rtol=2e-3), (tag, err)
        return out

    # Extra correctness check with a non-zero conv2 weight so the layer2 path
    # is actually exercised numerically (zero-init makes it invisible).
    test_params = dict(params)
    test_params['conv2_w'] = rnd(keys[13], (9, Cout, Cout))
    check(test_params, "nonzero_conv2")

    # Module-faithful parameters (conv2 weight zeroed as in __init__).
    out = check(params, "module_init")
    jax.block_until_ready(out)
    print("KERNEL_OK")
</pallas_src>

<mosaic_0001>
module attributes {stable_mosaic.version = 11 : i64} {
  func.func @residual_block_kernel(%arg0: i32, %arg1: memref<1x8x8x32xf32, #tpu.memory_space<vmem>>, %arg2: memref<1x1x48xf32, #tpu.memory_space<vmem>>, %arg3: memref<32x32xf32, #tpu.memory_space<vmem>>, %arg4: memref<1x32xf32, #tpu.memory_space<vmem>>, %arg5: memref<1x32xf32, #tpu.memory_space<vmem>>, %arg6: memref<3x96x64xf32, #tpu.memory_space<vmem>>, %arg7: memref<1x64xf32, #tpu.memory_space<vmem>>, %arg8: memref<48x128xf32, #tpu.memory_space<vmem>>, %arg9: memref<1x128xf32, #tpu.memory_space<vmem>>, %arg10: memref<64x64xf32, #tpu.memory_space<vmem>>, %arg11: memref<1x64xf32, #tpu.memory_space<vmem>>, %arg12: memref<1x64xf32, #tpu.memory_space<vmem>>, %arg13: memref<3x192x64xf32, #tpu.memory_space<vmem>>, %arg14: memref<1x64xf32, #tpu.memory_space<vmem>>, %arg15: memref<32x64xf32, #tpu.memory_space<vmem>>, %arg16: memref<1x64xf32, #tpu.memory_space<vmem>>, %arg17: memref<1x8x8x64xf32, #tpu.memory_space<vmem>>, %arg18: memref<10x10x32xf32, #tpu.memory_space<vmem>>, %arg19: memref<10x10x64xf32, #tpu.memory_space<vmem>>) attributes {dimension_semantics = [#tpu.dimension_semantics<parallel>], iteration_bounds = array<i64: 2>, scalar_prefetch = 0 : i64, scratch_operands = 2 : i64, tpu.core_type = #tpu.core_type<tc>, window_params = [{transform_indices = @transform_0, window_bounds = array<i64: 1, 8, 8, 32>}, {transform_indices = @transform_1, window_bounds = array<i64: 1, 1, 48>}, {pipeline_mode = #tpu.pipeline_mode<synchronous>, transform_indices = @transform_2, window_bounds = array<i64: 32, 32>}, {pipeline_mode = #tpu.pipeline_mode<synchronous>, transform_indices = @transform_3, window_bounds = array<i64: 1, 32>}, {pipeline_mode = #tpu.pipeline_mode<synchronous>, transform_indices = @transform_4, window_bounds = array<i64: 1, 32>}, {pipeline_mode = #tpu.pipeline_mode<synchronous>, transform_indices = @transform_5, window_bounds = array<i64: 3, 96, 64>}, {pipeline_mode = #tpu.pipeline_mode<synchronous>, transform_indices = @transform_6, window_bounds = array<i64: 1, 64>}, {pipeline_mode = #tpu.pipeline_mode<synchronous>, transform_indices = @transform_7, window_bounds = array<i64: 48, 128>}, {pipeline_mode = #tpu.pipeline_mode<synchronous>, transform_indices = @transform_8, window_bounds = array<i64: 1, 128>}, {pipeline_mode = #tpu.pipeline_mode<synchronous>, transform_indices = @transform_9, window_bounds = array<i64: 64, 64>}, {pipeline_mode = #tpu.pipeline_mode<synchronous>, transform_indices = @transform_10, window_bounds = array<i64: 1, 64>}, {pipeline_mode = #tpu.pipeline_mode<synchronous>, transform_indices = @transform_11, window_bounds = array<i64: 1, 64>}, {pipeline_mode = #tpu.pipeline_mode<synchronous>, transform_indices = @transform_12, window_bounds = array<i64: 3, 192, 64>}, {pipeline_mode = #tpu.pipeline_mode<synchronous>, transform_indices = @transform_13, window_bounds = array<i64: 1, 64>}, {pipeline_mode = #tpu.pipeline_mode<synchronous>, transform_indices = @transform_14, window_bounds = array<i64: 32, 64>}, {pipeline_mode = #tpu.pipeline_mode<synchronous>, transform_indices = @transform_15, window_bounds = array<i64: 1, 64>}, {transform_indices = @transform_16, window_bounds = array<i64: 1, 8, 8, 64>}]} {
    %c0 = arith.constant 0 : index
    %c0_0 = arith.constant 0 : index
    %c0_1 = arith.constant 0 : index
    %c0_2 = arith.constant 0 : index
    %0 = vector.load %arg1[%c0, %c0_0, %c0_1, %c0_2] : memref<1x8x8x32xf32, #tpu.memory_space<vmem>>, vector<1x8x8x32xf32>
    %1 = vector.shape_cast %0 : vector<1x8x8x32xf32> to vector<8x8x32xf32>
    %2 = vector.shape_cast %1 : vector<8x8x32xf32> to vector<64x32xf32>
    %c0_3 = arith.constant 0 : index
    %c0_4 = arith.constant 0 : index
    %3 = vector.load %arg3[%c0_3, %c0_4] : memref<32x32xf32, #tpu.memory_space<vmem>>, vector<32x32xf32>
    %c0_5 = arith.constant 0 : index
    %c0_6 = arith.constant 0 : index
    %4 = vector.load %arg4[%c0_5, %c0_6] : memref<1x32xf32, #tpu.memory_space<vmem>>, vector<1x32xf32>
    %c0_7 = arith.constant 0 : index
    %c0_8 = arith.constant 0 : index
    %5 = vector.load %arg5[%c0_7, %c0_8] : memref<1x32xf32, #tpu.memory_space<vmem>>, vector<1x32xf32>
    %cst = arith.constant dense<0.000000e+00> : vector<32xf32>
    %6 = vector.multi_reduction <add>, %2, %cst [0] : vector<64x32xf32> to vector<32xf32>
    %7 = vector.shape_cast %6 : vector<32xf32> to vector<1x32xf32>
    %8 = arith.mulf %2, %2 : vector<64x32xf32>
    %cst_9 = arith.constant dense<0.000000e+00> : vector<32xf32>
    %9 = vector.multi_reduction <add>, %8, %cst_9 [0] : vector<64x32xf32> to vector<32xf32>
    %10 = vector.shape_cast %9 : vector<32xf32> to vector<1x32xf32>
    %11 = tpu.concatenate %7, %10 in 0 : vector<1x32xf32>, vector<1x32xf32> -> vector<2x32xf32>
    %cst_10 = arith.constant dense<0.000000e+00> : vector<2x32xf32>
    %12 = tpu.matmul %11, %3, %cst_10 {dimension_numbers = #tpu.dot_dimension_numbers<[1], [0], [0], [1], [0, 0, 1, 1], [], []>} : vector<2x32xf32>, vector<32x32xf32>, vector<2x32xf32> -> vector<2x32xf32>
    %13 = vector.extract_strided_slice %12 {offsets = [0, 0], sizes = [1, 32], strides = [1, 1]} : vector<2x32xf32> to vector<1x32xf32>
    %14 = vector.extract_strided_slice %12 {offsets = [1, 0], sizes = [1, 32], strides = [1, 1]} : vector<2x32xf32> to vector<1x32xf32>
    %15 = arith.mulf %13, %13 : vector<1x32xf32>
    %16 = arith.subf %14, %15 : vector<1x32xf32>
    %cst_11 = arith.constant 0.000000e+00 : f32
    %17 = vector.broadcast %cst_11 : f32 to vector<1x32xf32>
    %18 = arith.maximumf %16, %17 : vector<1x32xf32>
    %cst_12 = arith.constant 9.99999974E-6 : f32
    %19 = vector.broadcast %cst_12 : f32 to vector<1x32xf32>
    %20 = arith.addf %18, %19 : vector<1x32xf32>
    %21 = math.rsqrt %20 : vector<1x32xf32>
    %22 = vector.broadcast %13 : vector<1x32xf32> to vector<64x32xf32>
    %23 = arith.subf %2, %22 : vector<64x32xf32>
    %24 = arith.mulf %21, %4 : vector<1x32xf32>
    %25 = vector.broadcast %24 : vector<1x32xf32> to vector<64x32xf32>
    %26 = arith.mulf %23, %25 : vector<64x32xf32>
    %27 = vector.broadcast %5 : vector<1x32xf32> to vector<64x32xf32>
    %28 = arith.addf %26, %27 : vector<64x32xf32>
    %29 = arith.negf %28 : vector<64x32xf32>
    %30 = math.exp %29 : vector<64x32xf32>
    %cst_13 = arith.constant 1.000000e+00 : f32
    %31 = vector.broadcast %cst_13 : f32 to vector<64x32xf32>
    %32 = arith.addf %31, %30 : vector<64x32xf32>
    %33 = arith.divf %31, %32 : vector<64x32xf32>
    %34 = arith.mulf %28, %33 : vector<64x32xf32>
    %35 = vector.shape_cast %34 : vector<64x32xf32> to vector<8x8x32xf32>
    %c1 = arith.constant 1 : index
    %c1_14 = arith.constant 1 : index
    %c0_15 = arith.constant 0 : index
    %36 = vector.load %arg18[%c1, %c1_14, %c0_15] : memref<10x10x32xf32, #tpu.memory_space<vmem>>, vector<8x8x32xf32>
    tpu.vector_store %arg18[%c1, %c1_14, %c0_15], %35 {strides = array<i32>} : memref<10x10x32xf32, #tpu.memory_space<vmem>>, vector<8x8x32xf32>,
    %cst_16 = arith.constant 0.000000e+00 : f32
    %37 = vector.broadcast %cst_16 : f32 to vector<1x10x32xf32>
    %cst_17 = arith.constant 0.000000e+00 : f32
    %38 = vector.broadcast %cst_17 : f32 to vector<8x1x32xf32>
    %c0_18 = arith.constant 0 : index
    %c0_19 = arith.constant 0 : index
    %c0_20 = arith.constant 0 : index
    %39 = vector.load %arg18[%c0_18, %c0_19, %c0_20] : memref<10x10x32xf32, #tpu.memory_space<vmem>>, vector<1x10x32xf32>
    tpu.vector_store %arg18[%c0_18, %c0_19, %c0_20], %37 {strides = array<i32>} : memref<10x10x32xf32, #tpu.memory_space<vmem>>, vector<1x10x32xf32>,
    %c9 = arith.constant 9 : index
    %c0_21 = arith.constant 0 : index
    %c0_22 = arith.constant 0 : index
    %40 = vector.load %arg18[%c9, %c0_21, %c0_22] : memref<10x10x32xf32, #tpu.memory_space<vmem>>, vector<1x10x32xf32>
    tpu.vector_store %arg18[%c9, %c0_21, %c0_22], %37 {strides = array<i32>} : memref<10x10x32xf32, #tpu.memory_space<vmem>>, vector<1x10x32xf32>,
    %c1_23 = arith.constant 1 : index
    %c0_24 = arith.constant 0 : index
    %c0_25 = arith.constant 0 : index
    %41 = vector.load %arg18[%c1_23, %c0_24, %c0_25] : memref<10x10x32xf32, #tpu.memory_space<vmem>>, vector<8x1x32xf32>
    tpu.vector_store %arg18[%c1_23, %c0_24, %c0_25], %38 {strides = array<i32>} : memref<10x10x32xf32, #tpu.memory_space<vmem>>, vector<8x1x32xf32>,
    %c1_26 = arith.constant 1 : index
    %c9_27 = arith.constant 9 : index
    %c0_28 = arith.constant 0 : index
    %42 = vector.load %arg18[%c1_26, %c9_27, %c0_28] : memref<10x10x32xf32, #tpu.memory_space<vmem>>, vector<8x1x32xf32>
    tpu.vector_store %arg18[%c1_26, %c9_27, %c0_28], %38 {strides = array<i32>} : memref<10x10x32xf32, #tpu.memory_space<vmem>>, vector<8x1x32xf32>,
    %c0_29 = arith.constant 0 : index
    %c0_30 = arith.constant 0 : index
    %43 = vector.load %arg7[%c0_29, %c0_30] : memref<1x64xf32, #tpu.memory_space<vmem>>, vector<1x64xf32>
    %c0_31 = arith.constant 0 : index
    %c0_32 = arith.constant 0 : index
    %c0_33 = arith.constant 0 : index
    %44 = vector.load %arg18[%c0_31, %c0_32, %c0_33] : memref<10x10x32xf32, #tpu.memory_space<vmem>>, vector<10x8x32xf32>
    %c0_34 = arith.constant 0 : index
    %c1_35 = arith.constant 1 : index
    %c0_36 = arith.constant 0 : index
    %45 = vector.load %arg18[%c0_34, %c1_35, %c0_36] : memref<10x10x32xf32, #tpu.memory_space<vmem>>, vector<10x8x32xf32>
    %c0_37 = arith.constant 0 : index
    %c2 = arith.constant 2 : index
    %c0_38 = arith.constant 0 : index
    %46 = vector.load %arg18[%c0_37, %c2, %c0_38] : memref<10x10x32xf32, #tpu.memory_space<vmem>>, vector<10x8x32xf32>
    %47 = tpu.concatenate %44, %45, %46 in 2 : vector<10x8x32xf32>, vector<10x8x32xf32>, vector<10x8x32xf32> -> vector<10x8x96xf32>
    %48 = vector.shape_cast %43 : vector<1x64xf32> to vector<1x64xf32>
    %49 = vector.broadcast %48 : vector<1x64xf32> to vector<64x64xf32>
    %50 = vector.extract_strided_slice %47 {offsets = [0, 0, 0], sizes = [8, 8, 96], strides = [1, 1, 1]} : vector<10x8x96xf32> to vector<8x8x96xf32>
    %51 = vector.shape_cast %50 : vector<8x8x96xf32> to vector<64x96xf32>
    %c0_39 = arith.constant 0 : index
    %c0_40 = arith.constant 0 : index
    %c0_41 = arith.constant 0 : index
    %52 = vector.load %arg6[%c0_39, %c0_40, %c0_41] : memref<3x96x64xf32, #tpu.memory_space<vmem>>, vector<1x96x64xf32>
    %53 = vector.shape_cast %52 : vector<1x96x64xf32> to vector<96x64xf32>
    %cst_42 = arith.constant dense<0.000000e+00> : vector<64x64xf32>
    %54 = tpu.matmul %51, %53, %cst_42 {dimension_numbers = #tpu.dot_dimension_numbers<[1], [0], [0], [1], [0, 0, 1, 1], [], []>} : vector<64x96xf32>, vector<96x64xf32>, vector<64x64xf32> -> vector<64x64xf32>
    %55 = arith.addf %49, %54 : vector<64x64xf32>
    %56 = vector.extract_strided_slice %47 {offsets = [1, 0, 0], sizes = [8, 8, 96], strides = [1, 1, 1]} : vector<10x8x96xf32> to vector<8x8x96xf32>
    %57 = vector.shape_cast %56 : vector<8x8x96xf32> to vector<64x96xf32>
    %c1_43 = arith.constant 1 : index
    %c0_44 = arith.constant 0 : index
    %c0_45 = arith.constant 0 : index
    %58 = vector.load %arg6[%c1_43, %c0_44, %c0_45] : memref<3x96x64xf32, #tpu.memory_space<vmem>>, vector<1x96x64xf32>
    %59 = vector.shape_cast %58 : vector<1x96x64xf32> to vector<96x64xf32>
    %cst_46 = arith.constant dense<0.000000e+00> : vector<64x64xf32>
    %60 = tpu.matmul %57, %59, %cst_46 {dimension_numbers = #tpu.dot_dimension_numbers<[1], [0], [0], [1], [0, 0, 1, 1], [], []>} : vector<64x96xf32>, vector<96x64xf32>, vector<64x64xf32> -> vector<64x64xf32>
    %61 = arith.addf %55, %60 : vector<64x64xf32>
    %62 = vector.extract_strided_slice %47 {offsets = [2, 0, 0], sizes = [8, 8, 96], strides = [1, 1, 1]} : vector<10x8x96xf32> to vector<8x8x96xf32>
    %63 = vector.shape_cast %62 : vector<8x8x96xf32> to vector<64x96xf32>
    %c2_47 = arith.constant 2 : index
    %c0_48 = arith.constant 0 : index
    %c0_49 = arith.constant 0 : index
    %64 = vector.load %arg6[%c2_47, %c0_48, %c0_49] : memref<3x96x64xf32, #tpu.memory_space<vmem>>, vector<1x96x64xf32>
    %65 = vector.shape_cast %64 : vector<1x96x64xf32> to vector<96x64xf32>
    %cst_50 = arith.constant dense<0.000000e+00> : vector<64x64xf32>
    %66 = tpu.matmul %63, %65, %cst_50 {dimension_numbers = #tpu.dot_dimension_numbers<[1], [0], [0], [1], [0, 0, 1, 1], [], []>} : vector<64x96xf32>, vector<96x64xf32>, vector<64x64xf32> -> vector<64x64xf32>
    %67 = arith.addf %61, %66 : vector<64x64xf32>
    %c0_51 = arith.constant 0 : index
    %c0_52 = arith.constant 0 : index
    %c0_53 = arith.constant 0 : index
    %68 = vector.load %arg2[%c0_51, %c0_52, %c0_53] : memref<1x1x48xf32, #tpu.memory_space<vmem>>, vector<1x1x48xf32>
    %69 = vector.shape_cast %68 : vector<1x1x48xf32> to vector<1x48xf32>
    %70 = arith.negf %69 : vector<1x48xf32>
    %71 = math.exp %70 : vector<1x48xf32>
    %cst_54 = arith.constant 1.000000e+00 : f32
    %72 = vector.broadcast %cst_54 : f32 to vector<1x48xf32>
    %73 = arith.addf %72, %71 : vector<1x48xf32>
    %74 = arith.divf %72, %73 : vector<1x48xf32>
    %75 = arith.mulf %69, %74 : vector<1x48xf32>
    %c0_55 = arith.constant 0 : index
    %c0_56 = arith.constant 0 : index
    %76 = vector.load %arg8[%c0_55, %c0_56] : memref<48x128xf32, #tpu.memory_space<vmem>>, vector<48x128xf32>
    %cst_57 = arith.constant dense<0.000000e+00> : vector<1x128xf32>
    %77 = tpu.matmul %75, %76, %cst_57 {dimension_numbers = #tpu.dot_dimension_numbers<[1], [0], [0], [1], [0, 0, 1, 1], [], []>} : vector<1x48xf32>, vector<48x128xf32>, vector<1x128xf32> -> vector<1x128xf32>
    %c0_58 = arith.constant 0 : index
    %c0_59 = arith.constant 0 : index
    %78 = vector.load %arg9[%c0_58, %c0_59] : memref<1x128xf32, #tpu.memory_space<vmem>>, vector<1x128xf32>
    %79 = arith.addf %77, %78 : vector<1x128xf32>
    %80 = vector.extract_strided_slice %79 {offsets = [0, 0], sizes = [1, 64], strides = [1, 1]} : vector<1x128xf32> to vector<1x64xf32>
    %81 = vector.extract_strided_slice %79 {offsets = [0, 64], sizes = [1, 64], strides = [1, 1]} : vector<1x128xf32> to vector<1x64xf32>
    %c0_60 = arith.constant 0 : index
    %c0_61 = arith.constant 0 : index
    %82 = vector.load %arg10[%c0_60, %c0_61] : memref<64x64xf32, #tpu.memory_space<vmem>>, vector<64x64xf32>
    %c0_62 = arith.constant 0 : index
    %c0_63 = arith.constant 0 : index
    %83 = vector.load %arg11[%c0_62, %c0_63] : memref<1x64xf32, #tpu.memory_space<vmem>>, vector<1x64xf32>
    %c0_64 = arith.constant 0 : index
    %c0_65 = arith.constant 0 : index
    %84 = vector.load %arg12[%c0_64, %c0_65] : memref<1x64xf32, #tpu.memory_space<vmem>>, vector<1x64xf32>
    %cst_66 = arith.constant dense<0.000000e+00> : vector<64xf32>
    %85 = vector.multi_reduction <add>, %67, %cst_66 [0] : vector<64x64xf32> to vector<64xf32>
    %86 = vector.shape_cast %85 : vector<64xf32> to vector<1x64xf32>
    %87 = arith.mulf %67, %67 : vector<64x64xf32>
    %cst_67 = arith.constant dense<0.000000e+00> : vector<64xf32>
    %88 = vector.multi_reduction <add>, %87, %cst_67 [0] : vector<64x64xf32> to vector<64xf32>
    %89 = vector.shape_cast %88 : vector<64xf32> to vector<1x64xf32>
    %90 = tpu.concatenate %86, %89 in 0 : vector<1x64xf32>, vector<1x64xf32> -> vector<2x64xf32>
    %cst_68 = arith.constant dense<0.000000e+00> : vector<2x64xf32>
    %91 = tpu.matmul %90, %82, %cst_68 {dimension_numbers = #tpu.dot_dimension_numbers<[1], [0], [0], [1], [0, 0, 1, 1], [], []>} : vector<2x64xf32>, vector<64x64xf32>, vector<2x64xf32> -> vector<2x64xf32>
    %92 = vector.extract_strided_slice %91 {offsets = [0, 0], sizes = [1, 64], strides = [1, 1]} : vector<2x64xf32> to vector<1x64xf32>
    %93 = vector.extract_strided_slice %91 {offsets = [1, 0], sizes = [1, 64], strides = [1, 1]} : vector<2x64xf32> to vector<1x64xf32>
    %94 = arith.mulf %92, %92 : vector<1x64xf32>
    %95 = arith.subf %93, %94 : vector<1x64xf32>
    %cst_69 = arith.constant 0.000000e+00 : f32
    %96 = vector.broadcast %cst_69 : f32 to vector<1x64xf32>
    %97 = arith.maximumf %95, %96 : vector<1x64xf32>
    %cst_70 = arith.constant 9.99999974E-6 : f32
    %98 = vector.broadcast %cst_70 : f32 to vector<1x64xf32>
    %99 = arith.addf %97, %98 : vector<1x64xf32>
    %100 = math.rsqrt %99 : vector<1x64xf32>
    %101 = vector.broadcast %92 : vector<1x64xf32> to vector<64x64xf32>
    %102 = arith.subf %67, %101 : vector<64x64xf32>
    %103 = arith.mulf %100, %83 : vector<1x64xf32>
    %104 = vector.broadcast %103 : vector<1x64xf32> to vector<64x64xf32>
    %105 = arith.mulf %102, %104 : vector<64x64xf32>
    %106 = vector.broadcast %84 : vector<1x64xf32> to vector<64x64xf32>
    %107 = arith.addf %105, %106 : vector<64x64xf32>
    %cst_71 = arith.constant 1.000000e+00 : f32
    %108 = vector.broadcast %cst_71 : f32 to vector<1x64xf32>
    %109 = arith.addf %108, %80 : vector<1x64xf32>
    %110 = vector.broadcast %109 : vector<1x64xf32> to vector<64x64xf32>
    %111 = arith.mulf %107, %110 : vector<64x64xf32>
    %112 = vector.broadcast %81 : vector<1x64xf32> to vector<64x64xf32>
    %113 = arith.addf %111, %112 : vector<64x64xf32>
    %114 = arith.negf %113 : vector<64x64xf32>
    %115 = math.exp %114 : vector<64x64xf32>
    %cst_72 = arith.constant 1.000000e+00 : f32
    %116 = vector.broadcast %cst_72 : f32 to vector<64x64xf32>
    %117 = arith.addf %116, %115 : vector<64x64xf32>
    %118 = arith.divf %116, %117 : vector<64x64xf32>
    %119 = arith.mulf %113, %118 : vector<64x64xf32>
    %120 = vector.shape_cast %119 : vector<64x64xf32> to vector<8x8x64xf32>
    %c1_73 = arith.constant 1 : index
    %c1_74 = arith.constant 1 : index
    %c0_75 = arith.constant 0 : index
    %121 = vector.load %arg19[%c1_73, %c1_74, %c0_75] : memref<10x10x64xf32, #tpu.memory_space<vmem>>, vector<8x8x64xf32>
    tpu.vector_store %arg19[%c1_73, %c1_74, %c0_75], %120 {strides = array<i32>} : memref<10x10x64xf32, #tpu.memory_space<vmem>>, vector<8x8x64xf32>,
    %cst_76 = arith.constant 0.000000e+00 : f32
    %122 = vector.broadcast %cst_76 : f32 to vector<1x10x64xf32>
    %cst_77 = arith.constant 0.000000e+00 : f32
    %123 = vector.broadcast %cst_77 : f32 to vector<8x1x64xf32>
    %c0_78 = arith.constant 0 : index
    %c0_79 = arith.constant 0 : index
    %c0_80 = arith.constant 0 : index
    %124 = vector.load %arg19[%c0_78, %c0_79, %c0_80] : memref<10x10x64xf32, #tpu.memory_space<vmem>>, vector<1x10x64xf32>
    tpu.vector_store %arg19[%c0_78, %c0_79, %c0_80], %122 {strides = array<i32>} : memref<10x10x64xf32, #tpu.memory_space<vmem>>, vector<1x10x64xf32>,
    %c9_81 = arith.constant 9 : index
    %c0_82 = arith.constant 0 : index
    %c0_83 = arith.constant 0 : index
    %125 = vector.load %arg19[%c9_81, %c0_82, %c0_83] : memref<10x10x64xf32, #tpu.memory_space<vmem>>, vector<1x10x64xf32>
    tpu.vector_store %arg19[%c9_81, %c0_82, %c0_83], %122 {strides = array<i32>} : memref<10x10x64xf32, #tpu.memory_space<vmem>>, vector<1x10x64xf32>,
    %c1_84 = arith.constant 1 : index
    %c0_85 = arith.constant 0 : index
    %c0_86 = arith.constant 0 : index
    %126 = vector.load %arg19[%c1_84, %c0_85, %c0_86] : memref<10x10x64xf32, #tpu.memory_space<vmem>>, vector<8x1x64xf32>
    tpu.vector_store %arg19[%c1_84, %c0_85, %c0_86], %123 {strides = array<i32>} : memref<10x10x64xf32, #tpu.memory_space<vmem>>, vector<8x1x64xf32>,
    %c1_87 = arith.constant 1 : index
    %c9_88 = arith.constant 9 : index
    %c0_89 = arith.constant 0 : index
    %127 = vector.load %arg19[%c1_87, %c9_88, %c0_89] : memref<10x10x64xf32, #tpu.memory_space<vmem>>, vector<8x1x64xf32>
    tpu.vector_store %arg19[%c1_87, %c9_88, %c0_89], %123 {strides = array<i32>} : memref<10x10x64xf32, #tpu.memory_space<vmem>>, vector<8x1x64xf32>,
    %c0_90 = arith.constant 0 : index
    %c0_91 = arith.constant 0 : index
    %128 = vector.load %arg14[%c0_90, %c0_91] : memref<1x64xf32, #tpu.memory_space<vmem>>, vector<1x64xf32>
    %c0_92 = arith.constant 0 : index
    %c0_93 = arith.constant 0 : index
    %c0_94 = arith.constant 0 : index
    %129 = vector.load %arg19[%c0_92, %c0_93, %c0_94] : memref<10x10x64xf32, #tpu.memory_space<vmem>>, vector<10x8x64xf32>
    %c0_95 = arith.constant 0 : index
    %c1_96 = arith.constant 1 : index
    %c0_97 = arith.constant 0 : index
    %130 = vector.load %arg19[%c0_95, %c1_96, %c0_97] : memref<10x10x64xf32, #tpu.memory_space<vmem>>, vector<10x8x64xf32>
    %c0_98 = arith.constant 0 : index
    %c2_99 = arith.constant 2 : index
    %c0_100 = arith.constant 0 : index
    %131 = vector.load %arg19[%c0_98, %c2_99, %c0_100] : memref<10x10x64xf32, #tpu.memory_space<vmem>>, vector<10x8x64xf32>
    %132 = tpu.concatenate %129, %130, %131 in 2 : vector<10x8x64xf32>, vector<10x8x64xf32>, vector<10x8x64xf32> -> vector<10x8x192xf32>
    %133 = vector.shape_cast %128 : vector<1x64xf32> to vector<1x64xf32>
    %134 = vector.broadcast %133 : vector<1x64xf32> to vector<64x64xf32>
    %135 = vector.extract_strided_slice %132 {offsets = [0, 0, 0], sizes = [8, 8, 192], strides = [1, 1, 1]} : vector<10x8x192xf32> to vector<8x8x192xf32>
    %136 = vector.shape_cast %135 : vector<8x8x192xf32> to vector<64x192xf32>
    %c0_101 = arith.constant 0 : index
    %c0_102 = arith.constant 0 : index
    %c0_103 = arith.constant 0 : index
    %137 = vector.load %arg13[%c0_101, %c0_102, %c0_103] : memref<3x192x64xf32, #tpu.memory_space<vmem>>, vector<1x192x64xf32>
    %138 = vector.shape_cast %137 : vector<1x192x64xf32> to vector<192x64xf32>
    %cst_104 = arith.constant dense<0.000000e+00> : vector<64x64xf32>
    %139 = tpu.matmul %136, %138, %cst_104 {dimension_numbers = #tpu.dot_dimension_numbers<[1], [0], [0], [1], [0, 0, 1, 1], [], []>} : vector<64x192xf32>, vector<192x64xf32>, vector<64x64xf32> -> vector<64x64xf32>
    %140 = arith.addf %134, %139 : vector<64x64xf32>
    %141 = vector.extract_strided_slice %132 {offsets = [1, 0, 0], sizes = [8, 8, 192], strides = [1, 1, 1]} : vector<10x8x192xf32> to vector<8x8x192xf32>
    %142 = vector.shape_cast %141 : vector<8x8x192xf32> to vector<64x192xf32>
    %c1_105 = arith.constant 1 : index
    %c0_106 = arith.constant 0 : index
    %c0_107 = arith.constant 0 : index
    %143 = vector.load %arg13[%c1_105, %c0_106, %c0_107] : memref<3x192x64xf32, #tpu.memory_space<vmem>>, vector<1x192x64xf32>
    %144 = vector.shape_cast %143 : vector<1x192x64xf32> to vector<192x64xf32>
    %cst_108 = arith.constant dense<0.000000e+00> : vector<64x64xf32>
    %145 = tpu.matmul %142, %144, %cst_108 {dimension_numbers = #tpu.dot_dimension_numbers<[1], [0], [0], [1], [0, 0, 1, 1], [], []>} : vector<64x192xf32>, vector<192x64xf32>, vector<64x64xf32> -> vector<64x64xf32>
    %146 = arith.addf %140, %145 : vector<64x64xf32>
    %147 = vector.extract_strided_slice %132 {offsets = [2, 0, 0], sizes = [8, 8, 192], strides = [1, 1, 1]} : vector<10x8x192xf32> to vector<8x8x192xf32>
    %148 = vector.shape_cast %147 : vector<8x8x192xf32> to vector<64x192xf32>
    %c2_109 = arith.constant 2 : index
    %c0_110 = arith.constant 0 : index
    %c0_111 = arith.constant 0 : index
    %149 = vector.load %arg13[%c2_109, %c0_110, %c0_111] : memref<3x192x64xf32, #tpu.memory_space<vmem>>, vector<1x192x64xf32>
    %150 = vector.shape_cast %149 : vector<1x192x64xf32> to vector<192x64xf32>
    %cst_112 = arith.constant dense<0.000000e+00> : vector<64x64xf32>
    %151 = tpu.matmul %148, %150, %cst_112 {dimension_numbers = #tpu.dot_dimension_numbers<[1], [0], [0], [1], [0, 0, 1, 1], [], []>} : vector<64x192xf32>, vector<192x64xf32>, vector<64x64xf32> -> vector<64x64xf32>
    %152 = arith.addf %146, %151 : vector<64x64xf32>
    %c0_113 = arith.constant 0 : index
    %c0_114 = arith.constant 0 : index
    %153 = vector.load %arg15[%c0_113, %c0_114] : memref<32x64xf32, #tpu.memory_space<vmem>>, vector<32x64xf32>
    %cst_115 = arith.constant dense<0.000000e+00> : vector<64x64xf32>
    %154 = tpu.matmul %2, %153, %cst_115 {dimension_numbers = #tpu.dot_dimension_numbers<[1], [0], [0], [1], [0, 0, 1, 1], [], []>} : vector<64x32xf32>, vector<32x64xf32>, vector<64x64xf32> -> vector<64x64xf32>
    %c0_116 = arith.constant 0 : index
    %c0_117 = arith.constant 0 : index
    %155 = vector.load %arg16[%c0_116, %c0_117] : memref<1x64xf32, #tpu.memory_space<vmem>>, vector<1x64xf32>
    %156 = vector.broadcast %155 : vector<1x64xf32> to vector<64x64xf32>
    %157 = arith.addf %154, %156 : vector<64x64xf32>
    %158 = arith.addf %152, %157 : vector<64x64xf32>
    %159 = vector.shape_cast %158 : vector<64x64xf32> to vector<8x8x64xf32>
    %c0_118 = arith.constant 0 : index
    %c0_119 = arith.constant 0 : index
    %c0_120 = arith.constant 0 : index
    %c0_121 = arith.constant 0 : index
    %160 = vector.load %arg17[%c0_118, %c0_119, %c0_120, %c0_121] : memref<1x8x8x64xf32, #tpu.memory_space<vmem>>, vector<1x8x8x64xf32>
    %161 = vector.shape_cast %160 : vector<1x8x8x64xf32> to vector<8x8x64xf32>
    %162 = vector.shape_cast %159 : vector<8x8x64xf32> to vector<1x8x8x64xf32>
    tpu.vector_store %arg17[%c0_118, %c0_119, %c0_120, %c0_121], %162 {strides = array<i32>} : memref<1x8x8x64xf32, #tpu.memory_space<vmem>>, vector<1x8x8x64xf32>,
    return
  }
  func.func @transform_0(%arg0: i32) -> (i32, i32, i32, i32) {
    %c0_i32 = arith.constant 0 : i32
    %c0_i32_0 = arith.constant 0 : i32
    %c0_i32_1 = arith.constant 0 : i32
    %c0_i32_2 = arith.constant 0 : i32
    return %arg0, %c0_i32, %c0_i32_0, %c0_i32_1 : i32, i32, i32, i32
  }
  func.func @transform_1(%arg0: i32) -> (i32, i32, i32) {
    %c0_i32 = arith.constant 0 : i32
    %c0_i32_0 = arith.constant 0 : i32
    %c0_i32_1 = arith.constant 0 : i32
    return %arg0, %c0_i32, %c0_i32_0 : i32, i32, i32
  }
  func.func @transform_2(%arg0: i32) -> (i32, i32) {
    %c0_i32 = arith.constant 0 : i32
    %c0_i32_0 = arith.constant 0 : i32
    %c0_i32_1 = arith.constant 0 : i32
    return %c0_i32, %c0_i32_0 : i32, i32
  }
  func.func @transform_3(%arg0: i32) -> (i32, i32) {
    %c0_i32 = arith.constant 0 : i32
    %c0_i32_0 = arith.constant 0 : i32
    %c0_i32_1 = arith.constant 0 : i32
    return %c0_i32, %c0_i32_0 : i32, i32
  }
  func.func @transform_4(%arg0: i32) -> (i32, i32) {
    %c0_i32 = arith.constant 0 : i32
    %c0_i32_0 = arith.constant 0 : i32
    %c0_i32_1 = arith.constant 0 : i32
    return %c0_i32, %c0_i32_0 : i32, i32
  }
  func.func @transform_5(%arg0: i32) -> (i32, i32, i32) {
    %c0_i32 = arith.constant 0 : i32
    %c0_i32_0 = arith.constant 0 : i32
    %c0_i32_1 = arith.constant 0 : i32
    %c0_i32_2 = arith.constant 0 : i32
    return %c0_i32, %c0_i32_0, %c0_i32_1 : i32, i32, i32
  }
  func.func @transform_6(%arg0: i32) -> (i32, i32) {
    %c0_i32 = arith.constant 0 : i32
    %c0_i32_0 = arith.constant 0 : i32
    %c0_i32_1 = arith.constant 0 : i32
    return %c0_i32, %c0_i32_0 : i32, i32
  }
  func.func @transform_7(%arg0: i32) -> (i32, i32) {
    %c0_i32 = arith.constant 0 : i32
    %c0_i32_0 = arith.constant 0 : i32
    %c0_i32_1 = arith.constant 0 : i32
    return %c0_i32, %c0_i32_0 : i32, i32
  }
  func.func @transform_8(%arg0: i32) -> (i32, i32) {
    %c0_i32 = arith.constant 0 : i32
    %c0_i32_0 = arith.constant 0 : i32
    %c0_i32_1 = arith.constant 0 : i32
    return %c0_i32, %c0_i32_0 : i32, i32
  }
  func.func @transform_9(%arg0: i32) -> (i32, i32) {
    %c0_i32 = arith.constant 0 : i32
    %c0_i32_0 = arith.constant 0 : i32
    %c0_i32_1 = arith.constant 0 : i32
    return %c0_i32, %c0_i32_0 : i32, i32
  }
  func.func @transform_10(%arg0: i32) -> (i32, i32) {
    %c0_i32 = arith.constant 0 : i32
    %c0_i32_0 = arith.constant 0 : i32
    %c0_i32_1 = arith.constant 0 : i32
    return %c0_i32, %c0_i32_0 : i32, i32
  }
  func.func @transform_11(%arg0: i32) -> (i32, i32) {
    %c0_i32 = arith.constant 0 : i32
    %c0_i32_0 = arith.constant 0 : i32
    %c0_i32_1 = arith.constant 0 : i32
    return %c0_i32, %c0_i32_0 : i32, i32
  }
  func.func @transform_12(%arg0: i32) -> (i32, i32, i32) {
    %c0_i32 = arith.constant 0 : i32
    %c0_i32_0 = arith.constant 0 : i32
    %c0_i32_1 = arith.constant 0 : i32
    %c0_i32_2 = arith.constant 0 : i32
    return %c0_i32, %c0_i32_0, %c0_i32_1 : i32, i32, i32
  }
  func.func @transform_13(%arg0: i32) -> (i32, i32) {
    %c0_i32 = arith.constant 0 : i32
    %c0_i32_0 = arith.constant 0 : i32
    %c0_i32_1 = arith.constant 0 : i32
    return %c0_i32, %c0_i32_0 : i32, i32
  }
  func.func @transform_14(%arg0: i32) -> (i32, i32) {
    %c0_i32 = arith.constant 0 : i32
    %c0_i32_0 = arith.constant 0 : i32
    %c0_i32_1 = arith.constant 0 : i32
    return %c0_i32, %c0_i32_0 : i32, i32
  }
  func.func @transform_15(%arg0: i32) -> (i32, i32) {
    %c0_i32 = arith.constant 0 : i32
    %c0_i32_0 = arith.constant 0 : i32
    %c0_i32_1 = arith.constant 0 : i32
    return %c0_i32, %c0_i32_0 : i32, i32
  }
  func.func @transform_16(%arg0: i32) -> (i32, i32, i32, i32) {
    %c0_i32 = arith.constant 0 : i32
    %c0_i32_0 = arith.constant 0 : i32
    %c0_i32_1 = arith.constant 0 : i32
    %c0_i32_2 = arith.constant 0 : i32
    return %arg0, %c0_i32, %c0_i32_0, %c0_i32_1 : i32, i32, i32, i32
  }
}

</mosaic_0001>

<llo_original>
// kernel: tpu_custom_call.1
$region0: #{tpu_custom_call.1}
  #allocation0 [shape = 'u32[]', space=smem, size = 0x4, offset = 0x4, fixed_abs, tag = 'smem constant byte address 0x4 - core index']
  #allocation1 [shape = 'u32[144,128]{1,0:T(1,128)}', space=vmem, size = 0x12000, scoped, tag = 'internal scratch']
  #allocation2 [shape = 'f32[10,10,32]{2,1,0:T(8,128)}', space=vmem, size = 0x14000, scoped, tag = 'scratch operand']
  #allocation3 [shape = 'f32[10,10,64]{2,1,0:T(8,128)}', space=vmem, size = 0x14000, scoped, tag = 'scratch operand']
  %s0 = inlined_call_operand.vmem [shape: f32[2,8,8,32], index: 0, kind: input, shape index: {}]
  %s1 = inlined_call_operand.vmem [shape: f32[2,1,48], index: 1, kind: input, shape index: {}]
  %s2 = inlined_call_operand.vmem [shape: f32[32,32], index: 2, kind: input, shape index: {}]
  %s3 = inlined_call_operand.vmem [shape: f32[1,32], index: 3, kind: input, shape index: {}]
  %s4 = inlined_call_operand.vmem [shape: f32[1,32], index: 4, kind: input, shape index: {}]
  %s5 = inlined_call_operand.vmem [shape: f32[3,96,64], index: 5, kind: input, shape index: {}]
  %s6 = inlined_call_operand.vmem [shape: f32[1,64], index: 6, kind: input, shape index: {}]
  %s7 = inlined_call_operand.vmem [shape: f32[48,128], index: 7, kind: input, shape index: {}]
  %s8 = inlined_call_operand.vmem [shape: f32[1,128], index: 8, kind: input, shape index: {}]
  %s9 = inlined_call_operand.vmem [shape: f32[64,64], index: 9, kind: input, shape index: {}]
  %s10 = inlined_call_operand.vmem [shape: f32[1,64], index: 10, kind: input, shape index: {}]
  %s11 = inlined_call_operand.vmem [shape: f32[1,64], index: 11, kind: input, shape index: {}]
  %s12 = inlined_call_operand.vmem [shape: f32[3,192,64], index: 12, kind: input, shape index: {}]
  %s13 = inlined_call_operand.vmem [shape: f32[1,64], index: 13, kind: input, shape index: {}]
  %s14 = inlined_call_operand.vmem [shape: f32[32,64], index: 14, kind: input, shape index: {}]
  %s15 = inlined_call_operand.vmem [shape: f32[1,64], index: 15, kind: input, shape index: {}]
  %s16 = inlined_call_operand.hbm [shape: f32[2,8,8,64], index: 16, kind: output, shape index: {}]
  %s17 = sld [smem:[#allocation0]]
  $region97: #{tpu_custom_call.1} parent=0
    _
  %s19 = ssub.s32 1, %s17
  %s20 = scalar_select 0, %s19, %s17
  $region1: #{tpu_custom_call.1} parent=0
    #allocation4 [shape = 'u8[65536]{0}', space=vmem, size = 0x10000, scoped, tag = 'output window, operand 0']
    #allocation5 [shape = 's32[2]{0}', space=sflag, size = 0x8, scoped, tag = 'scoped memory for tpu_custom_call.1']
    %21 = vsyncpa [#allocation5], 0
    %s22 = scalar_lea.sflag [#allocation5], 1
    %23 = vsyncpa %s22, 0
    loop: start=0, step=1, limit=4
    $region2: #{tpu_custom_call.1} parent=1 // loop_pre_header
      _
    $region3: #{tpu_custom_call.1} parent=1 // loop_header
      %s25 = sphi 0, %s29
      %p26 = scmp.ge.s32.totalorder %s25, 4
      %s35 = sphi 0, %s37
      %s38 = sphi 0, %s35
      %s39 = sphi 0, %s38
      %s55 = sphi 0, %s39
      %s61 = sphi 0, %s63
      %s64 = sphi 0, %s61
      %s65 = sphi 0, %s64
      %s81 = sphi 0, %s65
      %s85 = sphi 0, %s85
      %s87 = sphi 0, %s85
      %s88 = sphi 0, %s87
      %s102 = sphi 0, %s88
      %s106 = sphi 0, %s106
      %s108 = sphi 0, %s106
      %s109 = sphi 0, %s108
      %s123 = sphi 0, %s109
      %s127 = sphi 0, %s127
      %s129 = sphi 0, %s127
      %s130 = sphi 0, %s129
      %s144 = sphi 0, %s130
      %s148 = sphi 0, %s148
      %s150 = sphi 0, %s148
      %s151 = sphi 0, %s150
      %s165 = sphi 0, %s151
      %s169 = sphi 0, %s169
      %s171 = sphi 0, %s169
      %s172 = sphi 0, %s171
      %s186 = sphi 0, %s172
      %s190 = sphi 0, %s190
      %s192 = sphi 0, %s190
      %s193 = sphi 0, %s192
      %s207 = sphi 0, %s193
      %s211 = sphi 0, %s211
      %s213 = sphi 0, %s211
      %s214 = sphi 0, %s213
      %s228 = sphi 0, %s214
      %s232 = sphi 0, %s232
      %s234 = sphi 0, %s232
      %s235 = sphi 0, %s234
      %s249 = sphi 0, %s235
      %s253 = sphi 0, %s253
      %s255 = sphi 0, %s253
      %s256 = sphi 0, %s255
      %s270 = sphi 0, %s256
      %s274 = sphi 0, %s274
      %s276 = sphi 0, %s274
      %s277 = sphi 0, %s276
      %s291 = sphi 0, %s277
      %s295 = sphi 0, %s295
      %s297 = sphi 0, %s295
      %s298 = sphi 0, %s297
      %s312 = sphi 0, %s298
      %s316 = sphi 0, %s316
      %s318 = sphi 0, %s316
      %s319 = sphi 0, %s318
      %s333 = sphi 0, %s319
      %s337 = sphi 0, %s337
      %s339 = sphi 0, %s337
      %s340 = sphi 0, %s339
      %s354 = sphi 0, %s340
      %s358 = sphi 0, %s358
      %s360 = sphi 0, %s358
      %s361 = sphi 0, %s360
      %s375 = sphi 0, %s361
      %s381 = sphi 0, %s383
      %s384 = sphi 0, %s381
      %s385 = sphi 0, %s384
      %s401 = sphi 0, %s385
    $region4: #{tpu_custom_call.1} parent=1 // loop_header_branch
      %28 = sbr.rel (%p26) target = $region8
    $region5: #{tpu_custom_call.1} parent=1 // loop_body
      %s30 = ssub.s32 %s25, 1
      %s31 = ssub.s32 %s25, 2
      %s32 = sadd.s32 %s25, 1
      %s33 = ssub.s32 %s25, %s32
      %p34 = scmp.eq.s32.totalorder %s33, 0
      %s36 = sadd.s32 %s35, 1
      %s37 = scalar_select %p34, %s35, %s36
      %p40 = pneg %p34
      %p41 = scmp.eq.s32.totalorder %s25, 1
      %p42 = por %p40, %p41
      %p43 = scmp.ne.s32.totalorder %s35, %s38
      %p44 = scmp.eq.s32.totalorder %s25, 0
      %p45 = por %p43, %p44
      %p46 = scmp.ne.s32.totalorder %s35, %s38
      %p47 = scmp.eq.s32.totalorder %s30, 1
      %p48 = por %p46, %p47
      %p49 = scmp.ne.s32.totalorder %s38, %s39
      %p50 = scmp.eq.s32.totalorder %s30, 0
      %p51 = por %p49, %p50
      %p52 = scmp.ne.s32.totalorder %s38, %s39
      %p53 = scmp.eq.s32.totalorder %s31, 1
      %p54 = por %p52, %p53
      %p56 = scmp.ne.s32.totalorder %s39, %s55
      %p57 = scmp.eq.s32.totalorder %s31, 0
      %p58 = por %p56, %p57
      %s59 = ssub.s32 %s25, %s32
      %p60 = scmp.eq.s32.totalorder %s59, 0
      %s62 = sadd.s32 %s61, 1
      %s63 = scalar_select %p60, %s61, %s62
      %p66 = pneg %p60
      %p67 = scmp.eq.s32.totalorder %s25, 1
      %p68 = por %p66, %p67
      %p69 = scmp.ne.s32.totalorder %s61, %s64
      %p70 = scmp.eq.s32.totalorder %s25, 0
      %p71 = por %p69, %p70
      %p72 = scmp.ne.s32.totalorder %s61, %s64
      %p73 = scmp.eq.s32.totalorder %s30, 1
      %p74 = por %p72, %p73
      %p75 = scmp.ne.s32.totalorder %s64, %s65
      %p76 = scmp.eq.s32.totalorder %s30, 0
      %p77 = por %p75, %p76
      %p78 = scmp.ne.s32.totalorder %s64, %s65
      %p79 = scmp.eq.s32.totalorder %s31, 1
      %p80 = por %p78, %p79
      %p82 = scmp.ne.s32.totalorder %s65, %s81
      %p83 = scmp.eq.s32.totalorder %s31, 0
      %p84 = por %p82, %p83
      %s86 = sadd.s32 %s85, 1
      %p89 = scmp.eq.s32.totalorder %s25, 1
      %p90 = scmp.ne.s32.totalorder %s85, %s87
      %p91 = scmp.eq.s32.totalorder %s25, 0
      %p92 = por %p90, %p91
      %p93 = scmp.ne.s32.totalorder %s85, %s87
      %p94 = scmp.eq.s32.totalorder %s30, 1
      %p95 = por %p93, %p94
      %p96 = scmp.ne.s32.totalorder %s87, %s88
      %p97 = scmp.eq.s32.totalorder %s30, 0
      %p98 = por %p96, %p97
      %p99 = scmp.ne.s32.totalorder %s87, %s88
      %p100 = scmp.eq.s32.totalorder %s31, 1
      %p101 = por %p99, %p100
      %p103 = scmp.ne.s32.totalorder %s88, %s102
      %p104 = scmp.eq.s32.totalorder %s31, 0
      %p105 = por %p103, %p104
      %s107 = sadd.s32 %s106, 1
      %p110 = scmp.eq.s32.totalorder %s25, 1
      %p111 = scmp.ne.s32.totalorder %s106, %s108
      %p112 = scmp.eq.s32.totalorder %s25, 0
      %p113 = por %p111, %p112
      %p114 = scmp.ne.s32.totalorder %s106, %s108
      %p115 = scmp.eq.s32.totalorder %s30, 1
      %p116 = por %p114, %p115
      %p117 = scmp.ne.s32.totalorder %s108, %s109
      %p118 = scmp.eq.s32.totalorder %s30, 0
      %p119 = por %p117, %p118
      %p120 = scmp.ne.s32.totalorder %s108, %s109
      %p121 = scmp.eq.s32.totalorder %s31, 1
      %p122 = por %p120, %p121
      %p124 = scmp.ne.s32.totalorder %s109, %s123
      %p125 = scmp.eq.s32.totalorder %s31, 0
      %p126 = por %p124, %p125
      %s128 = sadd.s32 %s127, 1
      %p131 = scmp.eq.s32.totalorder %s25, 1
      %p132 = scmp.ne.s32.totalorder %s127, %s129
      %p133 = scmp.eq.s32.totalorder %s25, 0
      %p134 = por %p132, %p133
      %p135 = scmp.ne.s32.totalorder %s127, %s129
      %p136 = scmp.eq.s32.totalorder %s30, 1
      %p137 = por %p135, %p136
      %p138 = scmp.ne.s32.totalorder %s129, %s130
      %p139 = scmp.eq.s32.totalorder %s30, 0
      %p140 = por %p138, %p139
      %p141 = scmp.ne.s32.totalorder %s129, %s130
      %p142 = scmp.eq.s32.totalorder %s31, 1
      %p143 = por %p141, %p142
      %p145 = scmp.ne.s32.totalorder %s130, %s144
      %p146 = scmp.eq.s32.totalorder %s31, 0
      %p147 = por %p145, %p146
      %s149 = sadd.s32 %s148, 1
      %p152 = scmp.eq.s32.totalorder %s25, 1
      %p153 = scmp.ne.s32.totalorder %s148, %s150
      %p154 = scmp.eq.s32.totalorder %s25, 0
      %p155 = por %p153, %p154
      %p156 = scmp.ne.s32.totalorder %s148, %s150
      %p157 = scmp.eq.s32.totalorder %s30, 1
      %p158 = por %p156, %p157
      %p159 = scmp.ne.s32.totalorder %s150, %s151
      %p160 = scmp.eq.s32.totalorder %s30, 0
      %p161 = por %p159, %p160
      %p162 = scmp.ne.s32.totalorder %s150, %s151
      %p163 = scmp.eq.s32.totalorder %s31, 1
      %p164 = por %p162, %p163
      %p166 = scmp.ne.s32.totalorder %s151, %s165
      %p167 = scmp.eq.s32.totalorder %s31, 0
      %p168 = por %p166, %p167
      %s170 = sadd.s32 %s169, 1
      %p173 = scmp.eq.s32.totalorder %s25, 1
      %p174 = scmp.ne.s32.totalorder %s169, %s171
      %p175 = scmp.eq.s32.totalorder %s25, 0
      %p176 = por %p174, %p175
      %p177 = scmp.ne.s32.totalorder %s169, %s171
      %p178 = scmp.eq.s32.totalorder %s30, 1
      %p179 = por %p177, %p178
      %p180 = scmp.ne.s32.totalorder %s171, %s172
      %p181 = scmp.eq.s32.totalorder %s30, 0
      %p182 = por %p180, %p181
      %p183 = scmp.ne.s32.totalorder %s171, %s172
      %p184 = scmp.eq.s32.totalorder %s31, 1
      %p185 = por %p183, %p184
      %p187 = scmp.ne.s32.totalorder %s172, %s186
      %p188 = scmp.eq.s32.totalorder %s31, 0
      %p189 = por %p187, %p188
      %s191 = sadd.s32 %s190, 1
      %p194 = scmp.eq.s32.totalorder %s25, 1
      %p195 = scmp.ne.s32.totalorder %s190, %s192
      %p196 = scmp.eq.s32.totalorder %s25, 0
      %p197 = por %p195, %p196
      %p198 = scmp.ne.s32.totalorder %s190, %s192
      %p199 = scmp.eq.s32.totalorder %s30, 1
      %p200 = por %p198, %p199
      %p201 = scmp.ne.s32.totalorder %s192, %s193
      %p202 = scmp.eq.s32.totalorder %s30, 0
      %p203 = por %p201, %p202
      %p204 = scmp.ne.s32.totalorder %s192, %s193
      %p205 = scmp.eq.s32.totalorder %s31, 1
      %p206 = por %p204, %p205
      %p208 = scmp.ne.s32.totalorder %s193, %s207
      %p209 = scmp.eq.s32.totalorder %s31, 0
      %p210 = por %p208, %p209
      %s212 = sadd.s32 %s211, 1
      %p215 = scmp.eq.s32.totalorder %s25, 1
      %p216 = scmp.ne.s32.totalorder %s211, %s213
      %p217 = scmp.eq.s32.totalorder %s25, 0
      %p218 = por %p216, %p217
      %p219 = scmp.ne.s32.totalorder %s211, %s213
      %p220 = scmp.eq.s32.totalorder %s30, 1
      %p221 = por %p219, %p220
      %p222 = scmp.ne.s32.totalorder %s213, %s214
      %p223 = scmp.eq.s32.totalorder %s30, 0
      %p224 = por %p222, %p223
      %p225 = scmp.ne.s32.totalorder %s213, %s214
      %p226 = scmp.eq.s32.totalorder %s31, 1
      %p227 = por %p225, %p226
      %p229 = scmp.ne.s32.totalorder %s214, %s228
      %p230 = scmp.eq.s32.totalorder %s31, 0
      %p231 = por %p229, %p230
      %s233 = sadd.s32 %s232, 1
      %p236 = scmp.eq.s32.totalorder %s25, 1
      %p237 = scmp.ne.s32.totalorder %s232, %s234
      %p238 = scmp.eq.s32.totalorder %s25, 0
      %p239 = por %p237, %p238
      %p240 = scmp.ne.s32.totalorder %s232, %s234
      %p241 = scmp.eq.s32.totalorder %s30, 1
      %p242 = por %p240, %p241
      %p243 = scmp.ne.s32.totalorder %s234, %s235
      %p244 = scmp.eq.s32.totalorder %s30, 0
      %p245 = por %p243, %p244
      %p246 = scmp.ne.s32.totalorder %s234, %s235
      %p247 = scmp.eq.s32.totalorder %s31, 1
      %p248 = por %p246, %p247
      %p250 = scmp.ne.s32.totalorder %s235, %s249
      %p251 = scmp.eq.s32.totalorder %s31, 0
      %p252 = por %p250, %p251
      %s254 = sadd.s32 %s253, 1
      %p257 = scmp.eq.s32.totalorder %s25, 1
      %p258 = scmp.ne.s32.totalorder %s253, %s255
      %p259 = scmp.eq.s32.totalorder %s25, 0
      %p260 = por %p258, %p259
      %p261 = scmp.ne.s32.totalorder %s253, %s255
      %p262 = scmp.eq.s32.totalorder %s30, 1
      %p263 = por %p261, %p262
      %p264 = scmp.ne.s32.totalorder %s255, %s256
      %p265 = scmp.eq.s32.totalorder %s30, 0
      %p266 = por %p264, %p265
      %p267 = scmp.ne.s32.totalorder %s255, %s256
      %p268 = scmp.eq.s32.totalorder %s31, 1
      %p269 = por %p267, %p268
      %p271 = scmp.ne.s32.totalorder %s256, %s270
      %p272 = scmp.eq.s32.totalorder %s31, 0
      %p273 = por %p271, %p272
      %s275 = sadd.s32 %s274, 1
      %p278 = scmp.eq.s32.totalorder %s25, 1
      %p279 = scmp.ne.s32.totalorder %s274, %s276
      %p280 = scmp.eq.s32.totalorder %s25, 0
      %p281 = por %p279, %p280
      %p282 = scmp.ne.s32.totalorder %s274, %s276
      %p283 = scmp.eq.s32.totalorder %s30, 1
      %p284 = por %p282, %p283
      %p285 = scmp.ne.s32.totalorder %s276, %s277
      %p286 = scmp.eq.s32.totalorder %s30, 0
      %p287 = por %p285, %p286
      %p288 = scmp.ne.s32.totalorder %s276, %s277
      %p289 = scmp.eq.s32.totalorder %s31, 1
      %p290 = por %p288, %p289
      %p292 = scmp.ne.s32.totalorder %s277, %s291
      %p293 = scmp.eq.s32.totalorder %s31, 0
      %p294 = por %p292, %p293
      %s296 = sadd.s32 %s295, 1
      %p299 = scmp.eq.s32.totalorder %s25, 1
      %p300 = scmp.ne.s32.totalorder %s295, %s297
      %p301 = scmp.eq.s32.totalorder %s25, 0
      %p302 = por %p300, %p301
      %p303 = scmp.ne.s32.totalorder %s295, %s297
      %p304 = scmp.eq.s32.totalorder %s30, 1
      %p305 = por %p303, %p304
      %p306 = scmp.ne.s32.totalorder %s297, %s298
      %p307 = scmp.eq.s32.totalorder %s30, 0
      %p308 = por %p306, %p307
      %p309 = scmp.ne.s32.totalorder %s297, %s298
      %p310 = scmp.eq.s32.totalorder %s31, 1
      %p311 = por %p309, %p310
      %p313 = scmp.ne.s32.totalorder %s298, %s312
      %p314 = scmp.eq.s32.totalorder %s31, 0
      %p315 = por %p313, %p314
      %s317 = sadd.s32 %s316, 1
      %p320 = scmp.eq.s32.totalorder %s25, 1
      %p321 = scmp.ne.s32.totalorder %s316, %s318
      %p322 = scmp.eq.s32.totalorder %s25, 0
      %p323 = por %p321, %p322
      %p324 = scmp.ne.s32.totalorder %s316, %s318
      %p325 = scmp.eq.s32.totalorder %s30, 1
      %p326 = por %p324, %p325
      %p327 = scmp.ne.s32.totalorder %s318, %s319
      %p328 = scmp.eq.s32.totalorder %s30, 0
      %p329 = por %p327, %p328
      %p330 = scmp.ne.s32.totalorder %s318, %s319
      %p331 = scmp.eq.s32.totalorder %s31, 1
      %p332 = por %p330, %p331
      %p334 = scmp.ne.s32.totalorder %s319, %s333
      %p335 = scmp.eq.s32.totalorder %s31, 0
      %p336 = por %p334, %p335
      %s338 = sadd.s32 %s337, 1
      %p341 = scmp.eq.s32.totalorder %s25, 1
      %p342 = scmp.ne.s32.totalorder %s337, %s339
      %p343 = scmp.eq.s32.totalorder %s25, 0
      %p344 = por %p342, %p343
      %p345 = scmp.ne.s32.totalorder %s337, %s339
      %p346 = scmp.eq.s32.totalorder %s30, 1
      %p347 = por %p345, %p346
      %p348 = scmp.ne.s32.totalorder %s339, %s340
      %p349 = scmp.eq.s32.totalorder %s30, 0
      %p350 = por %p348, %p349
      %p351 = scmp.ne.s32.totalorder %s339, %s340
      %p352 = scmp.eq.s32.totalorder %s31, 1
      %p353 = por %p351, %p352
      %p355 = scmp.ne.s32.totalorder %s340, %s354
      %p356 = scmp.eq.s32.totalorder %s31, 0
      %p357 = por %p355, %p356
      %s359 = sadd.s32 %s358, 1
      %p362 = scmp.eq.s32.totalorder %s25, 1
      %p363 = scmp.ne.s32.totalorder %s358, %s360
      %p364 = scmp.eq.s32.totalorder %s25, 0
      %p365 = por %p363, %p364
      %p366 = scmp.ne.s32.totalorder %s358, %s360
      %p367 = scmp.eq.s32.totalorder %s30, 1
      %p368 = por %p366, %p367
      %p369 = scmp.ne.s32.totalorder %s360, %s361
      %p370 = scmp.eq.s32.totalorder %s30, 0
      %p371 = por %p369, %p370
      %p372 = scmp.ne.s32.totalorder %s360, %s361
      %p373 = scmp.eq.s32.totalorder %s31, 1
      %p374 = por %p372, %p373
      %p376 = scmp.ne.s32.totalorder %s361, %s375
      %p377 = scmp.eq.s32.totalorder %s31, 0
      %p378 = por %p376, %p377
      %s379 = ssub.s32 %s25, %s32
      %p380 = scmp.eq.s32.totalorder %s379, 0
      %s382 = sadd.s32 %s381, 1
      %s383 = scalar_select %p380, %s381, %s382
      %p386 = pneg %p380
      %p387 = scmp.eq.s32.totalorder %s25, 1
      %p388 = por %p386, %p387
      %p389 = scmp.ne.s32.totalorder %s381, %s384
      %p390 = scmp.eq.s32.totalorder %s25, 0
      %p391 = por %p389, %p390
      %p392 = scmp.ne.s32.totalorder %s381, %s384
      %p393 = scmp.eq.s32.totalorder %s30, 1
      %p394 = por %p392, %p393
      %p395 = scmp.ne.s32.totalorder %s384, %s385
      %p396 = scmp.eq.s32.totalorder %s30, 0
      %p397 = por %p395, %p396
      %p398 = scmp.ne.s32.totalorder %s384, %s385
      %p399 = scmp.eq.s32.totalorder %s31, 1
      %p400 = por %p398, %p399
      %p402 = scmp.ne.s32.totalorder %s385, %s401
      %p403 = scmp.eq.s32.totalorder %s31, 0
      %p404 = por %p402, %p403
      %p405 = scmp.le.s32.totalorder 1, %s25
      %p406 = scmp.lt.s32.totalorder %s25, 3
      %p407 = pnand %p405, %p406
      %p408 = pneg %p407
      // Predicated region
      $region9: #{tpu_custom_call.1} parent=5 // pred_check
        _
      $region10: #{tpu_custom_call.1} parent=5 // pred_check_branch
        %410 = sbr.rel (%p407) target = $region12
      $region11: #{tpu_custom_call.1} parent=5 // pred_region
        %s411 = ssub.s32 %s25, 1
        // Predicated region
        $region13: #{tpu_custom_call.1} parent=11 // pred_check
          %p412 = pneg %p98
        $region14: #{tpu_custom_call.1} parent=11 // pred_check_branch
          %414 = sbr.rel (%p412) target = $region16
        $region15: #{tpu_custom_call.1} parent=11 // pred_region
          _
        $region16: #{tpu_custom_call.1} parent=11 // pred_fallthru
          _
        // Predicated region
        $region17: #{tpu_custom_call.1} parent=11 // pred_check
          %p415 = pneg %p119
        $region18: #{tpu_custom_call.1} parent=11 // pred_check_branch
          %417 = sbr.rel (%p415) target = $region20
        $region19: #{tpu_custom_call.1} parent=11 // pred_region
          _
        $region20: #{tpu_custom_call.1} parent=11 // pred_fallthru
          _
        // Predicated region
        $region21: #{tpu_custom_call.1} parent=11 // pred_check
          %p418 = pneg %p140
        $region22: #{tpu_custom_call.1} parent=11 // pred_check_branch
          %420 = sbr.rel (%p418) target = $region24
        $region23: #{tpu_custom_call.1} parent=11 // pred_region
          _
        $region24: #{tpu_custom_call.1} parent=11 // pred_fallthru
          _
        // Predicated region
        $region25: #{tpu_custom_call.1} parent=11 // pred_check
          %p421 = pneg %p161
        $region26: #{tpu_custom_call.1} parent=11 // pred_check_branch
          %423 = sbr.rel (%p421) target = $region28
        $region27: #{tpu_custom_call.1} parent=11 // pred_region
          _
        $region28: #{tpu_custom_call.1} parent=11 // pred_fallthru
          _
        // Predicated region
        $region29: #{tpu_custom_call.1} parent=11 // pred_check
          %p424 = pneg %p182
        $region30: #{tpu_custom_call.1} parent=11 // pred_check_branch
          %426 = sbr.rel (%p424) target = $region32
        $region31: #{tpu_custom_call.1} parent=11 // pred_region
          _
        $region32: #{tpu_custom_call.1} parent=11 // pred_fallthru
          _
        // Predicated region
        $region33: #{tpu_custom_call.1} parent=11 // pred_check
          %p427 = pneg %p203
        $region34: #{tpu_custom_call.1} parent=11 // pred_check_branch
          %429 = sbr.rel (%p427) target = $region36
        $region35: #{tpu_custom_call.1} parent=11 // pred_region
          _
        $region36: #{tpu_custom_call.1} parent=11 // pred_fallthru
          _
        // Predicated region
        $region37: #{tpu_custom_call.1} parent=11 // pred_check
          %p430 = pneg %p224
        $region38: #{tpu_custom_call.1} parent=11 // pred_check_branch
          %432 = sbr.rel (%p430) target = $region40
        $region39: #{tpu_custom_call.1} parent=11 // pred_region
          _
        $region40: #{tpu_custom_call.1} parent=11 // pred_fallthru
          _
        // Predicated region
        $region41: #{tpu_custom_call.1} parent=11 // pred_check
          %p433 = pneg %p245
        $region42: #{tpu_custom_call.1} parent=11 // pred_check_branch
          %435 = sbr.rel (%p433) target = $region44
        $region43: #{tpu_custom_call.1} parent=11 // pred_region
          _
        $region44: #{tpu_custom_call.1} parent=11 // pred_fallthru
          _
        // Predicated region
        $region45: #{tpu_custom_call.1} parent=11 // pred_check
          %p436 = pneg %p266
        $region46: #{tpu_custom_call.1} parent=11 // pred_check_branch
          %438 = sbr.rel (%p436) target = $region48
        $region47: #{tpu_custom_call.1} parent=11 // pred_region
          _
        $region48: #{tpu_custom_call.1} parent=11 // pred_fallthru
          _
        // Predicated region
        $region49: #{tpu_custom_call.1} parent=11 // pred_check
          %p439 = pneg %p287
        $region50: #{tpu_custom_call.1} parent=11 // pred_check_branch
          %441 = sbr.rel (%p439) target = $region52
        $region51: #{tpu_custom_call.1} parent=11 // pred_region
          _
        $region52: #{tpu_custom_call.1} parent=11 // pred_fallthru
          _
        // Predicated region
        $region53: #{tpu_custom_call.1} parent=11 // pred_check
          %p442 = pneg %p308
        $region54: #{tpu_custom_call.1} parent=11 // pred_check_branch
          %444 = sbr.rel (%p442) target = $region56
        $region55: #{tpu_custom_call.1} parent=11 // pred_region
          _
        $region56: #{tpu_custom_call.1} parent=11 // pred_fallthru
          _
        // Predicated region
        $region57: #{tpu_custom_call.1} parent=11 // pred_check
          %p445 = pneg %p329
        $region58: #{tpu_custom_call.1} parent=11 // pred_check_branch
          %447 = sbr.rel (%p445) target = $region60
        $region59: #{tpu_custom_call.1} parent=11 // pred_region
          _
        $region60: #{tpu_custom_call.1} parent=11 // pred_fallthru
          _
        // Predicated region
        $region61: #{tpu_custom_call.1} parent=11 // pred_check
          %p448 = pneg %p350
        $region62: #{tpu_custom_call.1} parent=11 // pred_check_branch
          %450 = sbr.rel (%p448) target = $region64
        $region63: #{tpu_custom_call.1} parent=11 // pred_region
          _
        $region64: #{tpu_custom_call.1} parent=11 // pred_fallthru
          _
        // Predicated region
        $region65: #{tpu_custom_call.1} parent=11 // pred_check
          %p451 = pneg %p371
        $region66: #{tpu_custom_call.1} parent=11 // pred_check_branch
          %453 = sbr.rel (%p451) target = $region68
        $region67: #{tpu_custom_call.1} parent=11 // pred_region
          _
        $region68: #{tpu_custom_call.1} parent=11 // pred_fallthru
          _
      $region12: #{tpu_custom_call.1} parent=5 // pred_fallthru
        _
      %p454 = scmp.lt.s32.totalorder %s25, 2
      // Predicated region
      $region69: #{tpu_custom_call.1} parent=5 // pred_check
        %p455 = pneg %p454
      $region70: #{tpu_custom_call.1} parent=5 // pred_check_branch
        %457 = sbr.rel (%p455) target = $region72
      $region71: #{tpu_custom_call.1} parent=5 // pred_region
        // Predicated region
        $region73: #{tpu_custom_call.1} parent=71 // pred_check
          %p458 = pneg %p45
        $region74: #{tpu_custom_call.1} parent=71 // pred_check_branch
          %460 = sbr.rel (%p458) target = $region76
        $region75: #{tpu_custom_call.1} parent=71 // pred_region
          %p461 = scmp.lt.s32.totalorder %s25, 1
          %s462 = scalar_select %p461, %s25, 1
          %s463 = smul.addr %s462, 8
          %s464 = smul.addr %s463, 8
          %s465 = scalar_lea.vmem %s0, %s464
        $region76: #{tpu_custom_call.1} parent=71 // pred_fallthru
          _
        // Predicated region
        $region77: #{tpu_custom_call.1} parent=71 // pred_check
          %p466 = pneg %p71
        $region78: #{tpu_custom_call.1} parent=71 // pred_check_branch
          %468 = sbr.rel (%p466) target = $region80
        $region79: #{tpu_custom_call.1} parent=71 // pred_region
          %p469 = scmp.lt.s32.totalorder %s25, 1
          %s470 = scalar_select %p469, %s25, 1
          %s471 = scalar_lea.vmem %s1, %s470
        $region80: #{tpu_custom_call.1} parent=71 // pred_fallthru
          _
      $region72: #{tpu_custom_call.1} parent=5 // pred_fallthru
        _
      %p472 = scmp.le.s32.totalorder 1, %s25
      %p473 = scmp.lt.s32.totalorder %s25, 3
      %p474 = pnand %p472, %p473
      %p475 = pneg %p474
      // Predicated region
      $region81: #{tpu_custom_call.1} parent=5 // pred_check
        _
      $region82: #{tpu_custom_call.1} parent=5 // pred_check_branch
        %477 = sbr.rel (%p474) target = $region84
      $region83: #{tpu_custom_call.1} parent=5 // pred_region
        %s478 = ssub.s32 %s25, 1
        %p479 = scmp.lt.s32.totalorder %s30, 1
        %s480 = scalar_select %p479, %s30, 1
        %s481 = smul.addr %s480, 8
        %s482 = smul.addr %s481, 8
        %s483 = scalar_lea.vmem %s0, %s482
        %p484 = pneg %p51
        %p485 = pneg %p48
        %p486 = scmp.lt.s32.totalorder %s30, 1
        %s487 = scalar_select %p486, %s30, 1
        %s488 = scalar_lea.vmem %s1, %s487
        %p489 = pneg %p77
        %p490 = pneg %p74
        %p491 = pneg %p98
        %p492 = pneg %p95
        %p493 = pneg %p119
        %p494 = pneg %p116
        %p495 = pneg %p140
        %p496 = pneg %p137
        %p497 = pneg %p161
        %p498 = pneg %p158
        %p499 = pneg %p182
        %p500 = pneg %p179
        %p501 = pneg %p203
        %p502 = pneg %p200
        %p503 = pneg %p224
        %p504 = pneg %p221
        %p505 = pneg %p245
        %p506 = pneg %p242
        %p507 = pneg %p266
        %p508 = pneg %p263
        %p509 = pneg %p287
        %p510 = pneg %p284
        %p511 = pneg %p308
        %p512 = pneg %p305
        %p513 = pneg %p329
        %p514 = pneg %p326
        %p515 = pneg %p350
        %p516 = pneg %p347
        %p517 = pneg %p371
        %p518 = pneg %p368
        %p519 = pneg %p397
        %p520 = pneg %p394
        %s521 = sand.u32 %s384, 1
        %s522 = scalar_lea.sflag [#allocation5], %s521
        %s523 = sand.u32 %s384, 1
        %s524 = smul.addr %s523, 64
        %s525 = scalar_lea.vmem [#allocation4], %s524
        %p526 = scmp.lt.s32.totalorder %s30, 1
        %s527 = scalar_select %p526, %s30, 1
        %s528 = smul.addr %s527, 8
        %s529 = smul.addr %s528, 8
        %s530 = scalar_lea.vmem %s0, %s529
        %p531 = scmp.lt.s32.totalorder %s30, 1
        %s532 = scalar_select %p531, %s30, 1
        %s533 = scalar_lea.vmem %s1, %s532
        %v534 = vld [vmem:[%s530] sm:$0xff]
        %v535 = vld [vmem:[%s530 + $0x8] sm:$0xff]
        %v536 = vld [vmem:[%s530 + $0x10] sm:$0xff]
        %v537 = vld [vmem:[%s530 + $0x18] sm:$0xff]
        %v538 = vld [vmem:[%s530 + $0x20] sm:$0xff]
        %v539 = vld [vmem:[%s530 + $0x28] sm:$0xff]
        %v540 = vld [vmem:[%s530 + $0x30] sm:$0xff]
        %v541 = vld [vmem:[%s530 + $0x38] sm:$0xff]
        %v542 = vld [vmem:[%s2] sm:$0xff]
        %v543 = vld [vmem:[%s2 + $0x8] sm:$0xff]
        %v544 = vld [vmem:[%s2 + $0x10] sm:$0xff]
        %v545 = vld [vmem:[%s2 + $0x18] sm:$0xff]
        %v546 = vld [vmem:[%s3] sm:$0x1]
        %v547 = vld [vmem:[%s4] sm:$0x1]
        %vm548 = vcmask 261120
        %v549 = vsel %vm548, %v534, 0.0
        %v550 = vsel %vm548, %v535, 0.0
        %v551 = vadd.f32 %v549, %v550
        %v552 = vsel %vm548, %v536, 0.0
        %v553 = vadd.f32 %v551, %v552
        %v554 = vsel %vm548, %v537, 0.0
        %v555 = vadd.f32 %v553, %v554
        %v556 = vsel %vm548, %v538, 0.0
        %v557 = vadd.f32 %v555, %v556
        %v558 = vsel %vm548, %v539, 0.0
        %v559 = vadd.f32 %v557, %v558
        %v560 = vsel %vm548, %v540, 0.0
        %v561 = vadd.f32 %v559, %v560
        %v562 = vsel %vm548, %v541, 0.0
        %v563 = vadd.f32 %v561, %v562
        %v564 = vrot.slane %v563, 4
        %v565 = vadd.f32 %v563, %v564
        %v566 = vrot.slane %v565, 2
        %v567 = vadd.f32 %v565, %v566
        %v568 = vrot.slane %v567, 1
        %v569 = vadd.f32 %v567, %v568
        %v570 = vmul.f32 %v534, %v534
        %v571 = vmul.f32 %v535, %v535
        %v572 = vmul.f32 %v536, %v536
        %v573 = vmul.f32 %v537, %v537
        %v574 = vmul.f32 %v538, %v538
        %v575 = vmul.f32 %v539, %v539
        %v576 = vmul.f32 %v540, %v540
        %v577 = vmul.f32 %v541, %v541
        %v578 = vsel %vm548, %v570, 0.0
        %v579 = vsel %vm548, %v571, 0.0
        %v580 = vadd.f32 %v578, %v579
        %v581 = vsel %vm548, %v572, 0.0
        %v582 = vadd.f32 %v580, %v581
        %v583 = vsel %vm548, %v573, 0.0
        %v584 = vadd.f32 %v582, %v583
        %v585 = vsel %vm548, %v574, 0.0
        %v586 = vadd.f32 %v584, %v585
        %v587 = vsel %vm548, %v575, 0.0
        %v588 = vadd.f32 %v586, %v587
        %v589 = vsel %vm548, %v576, 0.0
        %v590 = vadd.f32 %v588, %v589
        %v591 = vsel %vm548, %v577, 0.0
        %v592 = vadd.f32 %v590, %v591
        %v593 = vrot.slane %v592, 4
        %v594 = vadd.f32 %v592, %v593
        %v595 = vrot.slane %v594, 2
        %v596 = vadd.f32 %v594, %v595
        %v597 = vrot.slane %v596, 1
        %v598 = vadd.f32 %v596, %v597
        %vm599 = vcmask 1040384
        %v600 = vsel %vm599, %v569, %v598
        %v602 = vsel %vm548, %v600, 0
        %604 = vmatprep.subr.mxu0 0.0
        %605 = vmatpush1.msra.mxu0 %v542
        %606 = vmatprep.subr.mxu0 0.0
        %607 = vmatpush1.msra.mxu0 %v543
        %608 = vmatprep.subr.mxu0 0.0
        %609 = vmatpush1.msra.mxu0 %v544
        %610 = vmatprep.subr.mxu0 0.0
        %611 = vmatpush1.msra.mxu0 %v545
        %612 = vmatprep.subr.mxu0 0.0
        %613 = vmatpush1.msra.mxu0 0.0
        %614 = vmatprep.subr.mxu0 0.0
        %615 = vmatpush1.msra.mxu0 0.0
        %616 = vmatprep.subr.mxu0 0.0
        %617 = vmatpush1.msra.mxu0 0.0
        %618 = vmatprep.subr.mxu0 0.0
        %619 = vmatpush1.msra.mxu0 0.0
        %620 = vmatprep.subr.mxu0 0.0
        %621 = vmatpush1.msra.mxu0 0.0
        %622 = vmatprep.subr.mxu0 0.0
        %623 = vmatpush1.msra.mxu0 0.0
        %624 = vmatprep.subr.mxu0 0.0
        %625 = vmatpush1.msra.mxu0 0.0
        %626 = vmatprep.subr.mxu0 0.0
        %627 = vmatpush1.msra.mxu0 0.0
        %628 = vmatprep.subr.mxu0 0.0
        %629 = vmatpush1.msra.mxu0 0.0
        %630 = vmatprep.subr.mxu0 0.0
        %631 = vmatpush1.msra.mxu0 0.0
        %632 = vmatprep.subr.mxu0 0.0
        %633 = vmatpush1.msra.mxu0 0.0
        %634 = vmatprep.subr.mxu0 0.0
        %635 = vmatpush1.msra.mxu0 0.0
        %636 = vmatprep.subr.mxu0 0.0
        %637 = vmatpush1.msra.mxu0 0.0
        %638 = vmatprep.subr.mxu0 0.0
        %639 = vmatpush1.msra.mxu0 0.0
        %640 = vmatprep.subr.mxu0 0.0
        %641 = vmatpush1.msra.mxu0 0.0
        %642 = vmatprep.subr.mxu0 0.0
        %643 = vmatpush1.msra.mxu0 0.0
        %644 = vmatprep.subr.mxu0 0.0
        %645 = vmatpush1.msra.mxu0 0.0
        %646 = vmatprep.subr.mxu0 0.0
        %647 = vmatpush1.msra.mxu0 0.0
        %648 = vmatprep.subr.mxu0 0.0
        %649 = vmatpush1.msra.mxu0 0.0
        %650 = vmatprep.subr.mxu0 0.0
        %651 = vmatpush1.msra.mxu0 0.0
        %652 = vmatprep.subr.mxu0 0.0
        %653 = vmatpush1.msra.mxu0 0.0
        %654 = vmatprep.subr.mxu0 0.0
        %655 = vmatpush1.msra.mxu0 0.0
        %656 = vmatprep.subr.mxu0 0.0
        %657 = vmatpush1.msra.mxu0 0.0
        %658 = vmatprep.subr.mxu0 0.0
        %659 = vmatpush1.msra.mxu0 0.0
        %660 = vmatprep.subr.mxu0 0.0
        %661 = vmatpush1.msra.mxu0 0.0
        %662 = vmatprep.subr.mxu0 0.0
        %663 = vmatpush1.msra.mxu0 0.0
        %664 = vmatprep.subr.mxu0 0.0
        %665 = vmatpush1.msra.mxu0 0.0
        %666 = vmatprep.subr.mxu0 0.0
        %667 = vmatpush1.msra.mxu0 0.0
        %668 = vmatprep.mubr.f32.mxu0 0.0
        %669 = vmatmul.mubr.f32.gmra.mrb[0].mxu0 %v602
        %v670 = vpop.f32.mrb[0].mxu0
        %v671 = vadd.f32 0.0, %v670
        %v672 = vpop.f32.mrb[0].mxu0
        %673 = vdwg.mxu0
        %v674 = vmul.f32 %v671, %v671
        %v676 = vrot.slane %v674, 7
        %v678 = vsub.f32 %v671, %v676
        %v679 = vmax.f32 %v678, 0.0
        %v680 = vadd.f32 %v679, 1e-05
        %v681 = vrsqrt.pop %v680
        %v682 = vlaneseq
        %v683 = vshrl.u32 %v682, 7
        %v684 = vsub.s32 0, %v683
        %v685 = vrot.slane %v671, %v684
        %v686 = vsub.f32 %v534, %v685
        %v687 = vsub.f32 %v535, %v685
        %v688 = vsub.f32 %v536, %v685
        %v689 = vsub.f32 %v537, %v685
        %v690 = vsub.f32 %v538, %v685
        %v691 = vsub.f32 %v539, %v685
        %v692 = vsub.f32 %v540, %v685
        %v693 = vsub.f32 %v541, %v685
        %v695 = vlaneseq
        %v696 = vshrl.u32 %v695, 7
        %v697 = vsub.s32 0, %v696
        %v698 = vrot.slane %v546, %v697
        %v700 = vmul.f32 %v681, %v698
        %v701 = vlaneseq
        %v702 = vshrl.u32 %v701, 7
        %v703 = vsub.s32 1, %v702
        %v704 = vrot.slane %v700, %v703
        %v705 = vmul.f32 %v686, %v704
        %v706 = vmul.f32 %v687, %v704
        %v707 = vmul.f32 %v688, %v704
        %v708 = vmul.f32 %v689, %v704
        %v709 = vmul.f32 %v690, %v704
        %v710 = vmul.f32 %v691, %v704
        %v711 = vmul.f32 %v692, %v704
        %v712 = vmul.f32 %v693, %v704
        %v714 = vlaneseq
        %v715 = vshrl.u32 %v714, 7
        %v716 = vsub.s32 0, %v715
        %v717 = vrot.slane %v547, %v716
        %v719 = vadd.f32 %v705, %v717
        %v720 = vadd.f32 %v706, %v717
        %v721 = vadd.f32 %v707, %v717
        %v722 = vadd.f32 %v708, %v717
        %v723 = vadd.f32 %v709, %v717
        %v724 = vadd.f32 %v710, %v717
        %v725 = vadd.f32 %v711, %v717
        %v726 = vadd.f32 %v712, %v717
        %v727 = vxor.u32 %v719, 2147483648
        %v728 = vxor.u32 %v720, 2147483648
        %v729 = vxor.u32 %v721, 2147483648
        %v730 = vxor.u32 %v722, 2147483648
        %v731 = vxor.u32 %v723, 2147483648
        %v732 = vxor.u32 %v724, 2147483648
        %v733 = vxor.u32 %v725, 2147483648
        %v734 = vxor.u32 %v726, 2147483648
        %v735 = vmul.f32 %v727, 1.442695
        %v736 = vpow.pop %v735
        %v737 = vmul.f32 %v728, 1.442695
        %v738 = vpow.pop %v737
        %v739 = vmul.f32 %v729, 1.442695
        %v740 = vpow.pop %v739
        %v741 = vmul.f32 %v730, 1.442695
        %v742 = vpow.pop %v741
        %v743 = vmul.f32 %v731, 1.442695
        %v744 = vpow.pop %v743
        %v745 = vmul.f32 %v732, 1.442695
        %v746 = vpow.pop %v745
        %v747 = vmul.f32 %v733, 1.442695
        %v748 = vpow.pop %v747
        %v749 = vmul.f32 %v734, 1.442695
        %v750 = vpow.pop %v749
        %v751 = vadd.f32 %v736, 1.0
        %v752 = vadd.f32 %v738, 1.0
        %v753 = vadd.f32 %v740, 1.0
        %v754 = vadd.f32 %v742, 1.0
        %v755 = vadd.f32 %v744, 1.0
        %v756 = vadd.f32 %v746, 1.0
        %v757 = vadd.f32 %v748, 1.0
        %v758 = vadd.f32 %v750, 1.0
        %v759 = vrcp.pop %v751
        %v760 = vmul.f32 1.0, %v759
        %v761 = vrcp.pop %v752
        %v762 = vmul.f32 1.0, %v761
        %v763 = vrcp.pop %v753
        %v764 = vmul.f32 1.0, %v763
        %v765 = vrcp.pop %v754
        %v766 = vmul.f32 1.0, %v765
        %v767 = vrcp.pop %v755
        %v768 = vmul.f32 1.0, %v767
        %v769 = vrcp.pop %v756
        %v770 = vmul.f32 1.0, %v769
        %v771 = vrcp.pop %v757
        %v772 = vmul.f32 1.0, %v771
        %v773 = vrcp.pop %v758
        %v774 = vmul.f32 1.0, %v773
        %v775 = vmul.f32 %v719, %v760
        %v776 = vmul.f32 %v720, %v762
        %v777 = vmul.f32 %v721, %v764
        %v778 = vmul.f32 %v722, %v766
        %v779 = vmul.f32 %v723, %v768
        %v780 = vmul.f32 %v724, %v770
        %v781 = vmul.f32 %v725, %v772
        %v782 = vmul.f32 %v726, %v774
        %s783 = scalar_lea.vmem [#allocation2], 16
        %784 = vst.msk [vmem:[%s783 + $0x1] sm:$0xff] %vm548, %v775
        %785 = vst.msk [vmem:[%s783 + $0x11] sm:$0xff] %vm548, %v776
        %786 = vst.msk [vmem:[%s783 + $0x21] sm:$0xff] %vm548, %v777
        %787 = vst.msk [vmem:[%s783 + $0x31] sm:$0xff] %vm548, %v778
        %788 = vst.msk [vmem:[%s783 + $0x41] sm:$0xff] %vm548, %v779
        %789 = vst.msk [vmem:[%s783 + $0x51] sm:$0xff] %vm548, %v780
        %790 = vst.msk [vmem:[%s783 + $0x61] sm:$0xff] %vm548, %v781
        %791 = vst.msk [vmem:[%s783 + $0x71] sm:$0xff] %vm548, %v782
        %792 = vst.msk [vmem:[#allocation2] sm:$0xff] %vm548, 0.0
        %vm793 = vcmask 254976
        %794 = vst.msk [vmem:[#allocation2 + $0x8] sm:$0x3] %vm793, 0.0
        %s795 = scalar_lea.vmem [#allocation2], 144
        %796 = vst.msk [vmem:[%s795] sm:$0xff] %vm548, 0.0
        %797 = vst.msk [vmem:[%s795 + $0x8] sm:$0x3] %vm793, 0.0
        %vm798 = vcmask 253952
        %799 = vst.msk [vmem:[%s783] sm:$0x1] %vm798, 0.0
        %800 = vst.msk [vmem:[%s783 + $0x10] sm:$0x1] %vm798, 0.0
        %801 = vst.msk [vmem:[%s783 + $0x20] sm:$0x1] %vm798, 0.0
        %802 = vst.msk [vmem:[%s783 + $0x30] sm:$0x1] %vm798, 0.0
        %803 = vst.msk [vmem:[%s783 + $0x40] sm:$0x1] %vm798, 0.0
        %804 = vst.msk [vmem:[%s783 + $0x50] sm:$0x1] %vm798, 0.0
        %805 = vst.msk [vmem:[%s783 + $0x60] sm:$0x1] %vm798, 0.0
        %806 = vst.msk [vmem:[%s783 + $0x70] sm:$0x1] %vm798, 0.0
        %807 = vst.msk [vmem:[%s783 + $0x9] sm:$0x1] %vm798, 0.0
        %808 = vst.msk [vmem:[%s783 + $0x19] sm:$0x1] %vm798, 0.0
        %809 = vst.msk [vmem:[%s783 + $0x29] sm:$0x1] %vm798, 0.0
        %810 = vst.msk [vmem:[%s783 + $0x39] sm:$0x1] %vm798, 0.0
        %811 = vst.msk [vmem:[%s783 + $0x49] sm:$0x1] %vm798, 0.0
        %812 = vst.msk [vmem:[%s783 + $0x59] sm:$0x1] %vm798, 0.0
        %813 = vst.msk [vmem:[%s783 + $0x69] sm:$0x1] %vm798, 0.0
        %814 = vst.msk [vmem:[%s783 + $0x79] sm:$0x1] %vm798, 0.0
        %v815 = vld [vmem:[%s6] sm:$0x1]
        %v816 = vld [vmem:[#allocation2] sm:$0xff]
        %v817 = vld [vmem:[#allocation2 + $0x10] sm:$0xff]
        %v818 = vld [vmem:[#allocation2 + $0x20] sm:$0xff]
        %v819 = vld [vmem:[#allocation2 + $0x30] sm:$0xff]
        %v820 = vld [vmem:[#allocation2 + $0x40] sm:$0xff]
        %v821 = vld [vmem:[#allocation2 + $0x50] sm:$0xff]
        %v822 = vld [vmem:[#allocation2 + $0x60] sm:$0xff]
        %v823 = vld [vmem:[#allocation2 + $0x70] sm:$0xff]
        %v824 = vld [vmem:[#allocation2 + $0x80] sm:$0xff]
        %v825 = vld [vmem:[#allocation2 + $0x90] sm:$0xff]
        %v826 = vld [vmem:[#allocation2 + $0x1] sm:$0xff]
        %v827 = vld [vmem:[#allocation2 + $0x11] sm:$0xff]
        %v828 = vld [vmem:[#allocation2 + $0x21] sm:$0xff]
        %v829 = vld [vmem:[#allocation2 + $0x31] sm:$0xff]
        %v830 = vld [vmem:[#allocation2 + $0x41] sm:$0xff]
        %v831 = vld [vmem:[#allocation2 + $0x51] sm:$0xff]
        %v832 = vld [vmem:[#allocation2 + $0x61] sm:$0xff]
        %v833 = vld [vmem:[#allocation2 + $0x71] sm:$0xff]
        %v834 = vld [vmem:[#allocation2 + $0x81] sm:$0xff]
        %v835 = vld [vmem:[#allocation2 + $0x91] sm:$0xff]
        %v836 = vld [vmem:[#allocation2 + $0x2] sm:$0xff]
        %v837 = vld [vmem:[#allocation2 + $0x12] sm:$0xff]
        %v838 = vld [vmem:[#allocation2 + $0x22] sm:$0xff]
        %v839 = vld [vmem:[#allocation2 + $0x32] sm:$0xff]
        %v840 = vld [vmem:[#allocation2 + $0x42] sm:$0xff]
        %v841 = vld [vmem:[#allocation2 + $0x52] sm:$0xff]
        %v842 = vld [vmem:[#allocation2 + $0x62] sm:$0xff]
        %v843 = vld [vmem:[#allocation2 + $0x72] sm:$0xff]
        %v844 = vld [vmem:[#allocation2 + $0x82] sm:$0xff]
        %v845 = vld [vmem:[#allocation2 + $0x92] sm:$0xff]
        %856 = vrot.lane.b32.xlu0 %v826, 32
        %v857 = vpop.permute.xlu0 %856
        %858 = vrot.lane.b32.xlu0 %v827, 32
        %v859 = vpop.permute.xlu0 %858
        %860 = vrot.lane.b32.xlu0 %v828, 32
        %v861 = vpop.permute.xlu0 %860
        %862 = vrot.lane.b32.xlu0 %v829, 32
        %v863 = vpop.permute.xlu0 %862
        %864 = vrot.lane.b32.xlu0 %v830, 32
        %v865 = vpop.permute.xlu0 %864
        %866 = vrot.lane.b32.xlu0 %v831, 32
        %v867 = vpop.permute.xlu0 %866
        %868 = vrot.lane.b32.xlu0 %v832, 32
        %v869 = vpop.permute.xlu0 %868
        %870 = vrot.lane.b32.xlu0 %v833, 32
        %v871 = vpop.permute.xlu0 %870
        %872 = vrot.lane.b32.xlu0 %v834, 32
        %v873 = vpop.permute.xlu0 %872
        %874 = vrot.lane.b32.xlu0 %v835, 32
        %v875 = vpop.permute.xlu0 %874
        %896 = vrot.lane.b32.xlu0 %v836, 64
        %v897 = vpop.permute.xlu0 %896
        %898 = vrot.lane.b32.xlu0 %v837, 64
        %v899 = vpop.permute.xlu0 %898
        %900 = vrot.lane.b32.xlu0 %v838, 64
        %v901 = vpop.permute.xlu0 %900
        %902 = vrot.lane.b32.xlu0 %v839, 64
        %v903 = vpop.permute.xlu0 %902
        %904 = vrot.lane.b32.xlu0 %v840, 64
        %v905 = vpop.permute.xlu0 %904
        %906 = vrot.lane.b32.xlu0 %v841, 64
        %v907 = vpop.permute.xlu0 %906
        %908 = vrot.lane.b32.xlu0 %v842, 64
        %v909 = vpop.permute.xlu0 %908
        %910 = vrot.lane.b32.xlu0 %v843, 64
        %v911 = vpop.permute.xlu0 %910
        %912 = vrot.lane.b32.xlu0 %v844, 64
        %v913 = vpop.permute.xlu0 %912
        %914 = vrot.lane.b32.xlu0 %v845, 64
        %v915 = vpop.permute.xlu0 %914
        %v926 = vsel %vm548, %v816, %v857
        %v927 = vsel %vm548, %v817, %v859
        %v928 = vsel %vm548, %v818, %v861
        %v929 = vsel %vm548, %v819, %v863
        %v930 = vsel %vm548, %v820, %v865
        %v931 = vsel %vm548, %v821, %v867
        %v932 = vsel %vm548, %v822, %v869
        %v933 = vsel %vm548, %v823, %v871
        %v934 = vsel %vm548, %v824, %v873
        %v935 = vsel %vm548, %v825, %v875
        %vm936 = vcmask 523264
        %v937 = vsel %vm936, %v926, %v897
        %v938 = vsel %vm936, %v927, %v899
        %v939 = vsel %vm936, %v928, %v901
        %v940 = vsel %vm936, %v929, %v903
        %v941 = vsel %vm936, %v930, %v905
        %v942 = vsel %vm936, %v931, %v907
        %v943 = vsel %vm936, %v932, %v909
        %v944 = vsel %vm936, %v933, %v911
        %v945 = vsel %vm936, %v934, %v913
        %v946 = vsel %vm936, %v935, %v915
        %v948 = vlaneseq
        %v949 = vshrl.u32 %v948, 7
        %v950 = vsub.s32 0, %v949
        %v951 = vrot.slane %v815, %v950
        %v953 = vld [vmem:[%s5] sm:$0xff]
        %v954 = vld [vmem:[%s5 + $0x8] sm:$0xff]
        %v955 = vld [vmem:[%s5 + $0x10] sm:$0xff]
        %v956 = vld [vmem:[%s5 + $0x18] sm:$0xff]
        %v957 = vld [vmem:[%s5 + $0x20] sm:$0xff]
        %v958 = vld [vmem:[%s5 + $0x28] sm:$0xff]
        %v959 = vld [vmem:[%s5 + $0x30] sm:$0xff]
        %v960 = vld [vmem:[%s5 + $0x38] sm:$0xff]
        %v961 = vld [vmem:[%s5 + $0x40] sm:$0xff]
        %v962 = vld [vmem:[%s5 + $0x48] sm:$0xff]
        %v963 = vld [vmem:[%s5 + $0x50] sm:$0xff]
        %v964 = vld [vmem:[%s5 + $0x58] sm:$0xff]
        %vm965 = vcmask 785408
        %v967 = vsel %vm965, %v937, 0
        %v970 = vsel %vm965, %v938, 0
        %v973 = vsel %vm965, %v939, 0
        %v976 = vsel %vm965, %v940, 0
        %v979 = vsel %vm965, %v941, 0
        %v982 = vsel %vm965, %v942, 0
        %v985 = vsel %vm965, %v943, 0
        %v988 = vsel %vm965, %v944, 0
        %990 = vmatprep.subr.mxu0 0.0
        %991 = vmatpush1.msra.mxu0 %v953
        %992 = vmatprep.subr.mxu0 0.0
        %993 = vmatpush1.msra.mxu0 %v954
        %994 = vmatprep.subr.mxu0 0.0
        %995 = vmatpush1.msra.mxu0 %v955
        %996 = vmatprep.subr.mxu0 0.0
        %997 = vmatpush1.msra.mxu0 %v956
        %998 = vmatprep.subr.mxu0 0.0
        %999 = vmatpush1.msra.mxu0 %v957
        %1000 = vmatprep.subr.mxu0 0.0
        %1001 = vmatpush1.msra.mxu0 %v958
        %1002 = vmatprep.subr.mxu0 0.0
        %1003 = vmatpush1.msra.mxu0 %v959
        %1004 = vmatprep.subr.mxu0 0.0
        %1005 = vmatpush1.msra.mxu0 %v960
        %1006 = vmatprep.subr.mxu0 0.0
        %1007 = vmatpush1.msra.mxu0 %v961
        %1008 = vmatprep.subr.mxu0 0.0
        %1009 = vmatpush1.msra.mxu0 %v962
        %1010 = vmatprep.subr.mxu0 0.0
        %1011 = vmatpush1.msra.mxu0 %v963
        %1012 = vmatprep.subr.mxu0 0.0
        %1013 = vmatpush1.msra.mxu0 %v964
        %1014 = vmatprep.subr.mxu0 0.0
        %1015 = vmatpush1.msra.mxu0 0.0
        %1016 = vmatprep.subr.mxu0 0.0
        %1017 = vmatpush1.msra.mxu0 0.0
        %1018 = vmatprep.subr.mxu0 0.0
        %1019 = vmatpush1.msra.mxu0 0.0
        %1020 = vmatprep.subr.mxu0 0.0
        %1021 = vmatpush1.msra.mxu0 0.0
        %1022 = vmatprep.subr.mxu0 0.0
        %1023 = vmatpush1.msra.mxu0 0.0
        %1024 = vmatprep.subr.mxu0 0.0
        %1025 = vmatpush1.msra.mxu0 0.0
        %1026 = vmatprep.subr.mxu0 0.0
        %1027 = vmatpush1.msra.mxu0 0.0
        %1028 = vmatprep.subr.mxu0 0.0
        %1029 = vmatpush1.msra.mxu0 0.0
        %1030 = vmatprep.subr.mxu0 0.0
        %1031 = vmatpush1.msra.mxu0 0.0
        %1032 = vmatprep.subr.mxu0 0.0
        %1033 = vmatpush1.msra.mxu0 0.0
        %1034 = vmatprep.subr.mxu0 0.0
        %1035 = vmatpush1.msra.mxu0 0.0
        %1036 = vmatprep.subr.mxu0 0.0
        %1037 = vmatpush1.msra.mxu0 0.0
        %1038 = vmatprep.subr.mxu0 0.0
        %1039 = vmatpush1.msra.mxu0 0.0
        %1040 = vmatprep.subr.mxu0 0.0
        %1041 = vmatpush1.msra.mxu0 0.0
        %1042 = vmatprep.subr.mxu0 0.0
        %1043 = vmatpush1.msra.mxu0 0.0
        %1044 = vmatprep.subr.mxu0 0.0
        %1045 = vmatpush1.msra.mxu0 0.0
        %1046 = vmatprep.subr.mxu0 0.0
        %1047 = vmatpush1.msra.mxu0 0.0
        %1048 = vmatprep.subr.mxu0 0.0
        %1049 = vmatpush1.msra.mxu0 0.0
        %1050 = vmatprep.subr.mxu0 0.0
        %1051 = vmatpush1.msra.mxu0 0.0
        %1052 = vmatprep.subr.mxu0 0.0
        %1053 = vmatpush1.msra.mxu0 0.0
        %1054 = vmatprep.mubr.f32.mxu0 0.0
        %1055 = vmatmul.mubr.f32.gmra.mrb[0].mxu0 %v967
        %v1056 = vpop.f32.mrb[0].mxu0
        %v1057 = vadd.f32 0.0, %v1056
        %v1058 = vpop.f32.mrb[0].mxu0
        %1059 = vmatprep.mubr.f32.mxu0 0.0
        %1060 = vmatmul.mubr.f32.gmra.mrb[0].mxu0 %v970
        %v1061 = vpop.f32.mrb[0].mxu0
        %v1062 = vadd.f32 0.0, %v1061
        %v1063 = vpop.f32.mrb[0].mxu0
        %1064 = vmatprep.mubr.f32.mxu0 0.0
        %1065 = vmatmul.mubr.f32.gmra.mrb[0].mxu0 %v973
        %v1066 = vpop.f32.mrb[0].mxu0
        %v1067 = vadd.f32 0.0, %v1066
        %v1068 = vpop.f32.mrb[0].mxu0
        %1069 = vmatprep.mubr.f32.mxu0 0.0
        %1070 = vmatmul.mubr.f32.gmra.mrb[0].mxu0 %v976
        %v1071 = vpop.f32.mrb[0].mxu0
        %v1072 = vadd.f32 0.0, %v1071
        %v1073 = vpop.f32.mrb[0].mxu0
        %1074 = vmatprep.mubr.f32.mxu0 0.0
        %1075 = vmatmul.mubr.f32.gmra.mrb[0].mxu0 %v979
        %v1076 = vpop.f32.mrb[0].mxu0
        %v1077 = vadd.f32 0.0, %v1076
        %v1078 = vpop.f32.mrb[0].mxu0
        %1079 = vmatprep.mubr.f32.mxu0 0.0
        %1080 = vmatmul.mubr.f32.gmra.mrb[0].mxu0 %v982
        %v1081 = vpop.f32.mrb[0].mxu0
        %v1082 = vadd.f32 0.0, %v1081
        %v1083 = vpop.f32.mrb[0].mxu0
        %1084 = vmatprep.mubr.f32.mxu0 0.0
        %1085 = vmatmul.mubr.f32.gmra.mrb[0].mxu0 %v985
        %v1086 = vpop.f32.mrb[0].mxu0
        %v1087 = vadd.f32 0.0, %v1086
        %v1088 = vpop.f32.mrb[0].mxu0
        %1089 = vmatprep.mubr.f32.mxu0 0.0
        %1090 = vmatmul.mubr.f32.gmra.mrb[0].mxu0 %v988
        %v1091 = vpop.f32.mrb[0].mxu0
        %v1092 = vadd.f32 0.0, %v1091
        %v1093 = vpop.f32.mrb[0].mxu0
        %1094 = vdwg.mxu0
        %v1095 = vadd.f32 %v951, %v1057
        %v1096 = vadd.f32 %v951, %v1062
        %v1097 = vadd.f32 %v951, %v1067
        %v1098 = vadd.f32 %v951, %v1072
        %v1099 = vadd.f32 %v951, %v1077
        %v1100 = vadd.f32 %v951, %v1082
        %v1101 = vadd.f32 %v951, %v1087
        %v1102 = vadd.f32 %v951, %v1092
        %s1103 = scalar_lea.vmem %s5, 96
        %v1104 = vld [vmem:[%s1103] sm:$0xff]
        %v1105 = vld [vmem:[%s1103 + $0x8] sm:$0xff]
        %v1106 = vld [vmem:[%s1103 + $0x10] sm:$0xff]
        %v1107 = vld [vmem:[%s1103 + $0x18] sm:$0xff]
        %v1108 = vld [vmem:[%s1103 + $0x20] sm:$0xff]
        %v1109 = vld [vmem:[%s1103 + $0x28] sm:$0xff]
        %v1110 = vld [vmem:[%s1103 + $0x30] sm:$0xff]
        %v1111 = vld [vmem:[%s1103 + $0x38] sm:$0xff]
        %v1112 = vld [vmem:[%s1103 + $0x40] sm:$0xff]
        %v1113 = vld [vmem:[%s1103 + $0x48] sm:$0xff]
        %v1114 = vld [vmem:[%s1103 + $0x50] sm:$0xff]
        %v1115 = vld [vmem:[%s1103 + $0x58] sm:$0xff]
        %v1117 = vsel %vm965, %v945, 0
        %1119 = vmatprep.subr.mxu0 0.0
        %1120 = vmatpush1.msra.mxu0 %v1104
        %1121 = vmatprep.subr.mxu0 0.0
        %1122 = vmatpush1.msra.mxu0 %v1105
        %1123 = vmatprep.subr.mxu0 0.0
        %1124 = vmatpush1.msra.mxu0 %v1106
        %1125 = vmatprep.subr.mxu0 0.0
        %1126 = vmatpush1.msra.mxu0 %v1107
        %1127 = vmatprep.subr.mxu0 0.0
        %1128 = vmatpush1.msra.mxu0 %v1108
        %1129 = vmatprep.subr.mxu0 0.0
        %1130 = vmatpush1.msra.mxu0 %v1109
        %1131 = vmatprep.subr.mxu0 0.0
        %1132 = vmatpush1.msra.mxu0 %v1110
        %1133 = vmatprep.subr.mxu0 0.0
        %1134 = vmatpush1.msra.mxu0 %v1111
        %1135 = vmatprep.subr.mxu0 0.0
        %1136 = vmatpush1.msra.mxu0 %v1112
        %1137 = vmatprep.subr.mxu0 0.0
        %1138 = vmatpush1.msra.mxu0 %v1113
        %1139 = vmatprep.subr.mxu0 0.0
        %1140 = vmatpush1.msra.mxu0 %v1114
        %1141 = vmatprep.subr.mxu0 0.0
        %1142 = vmatpush1.msra.mxu0 %v1115
        %1143 = vmatprep.subr.mxu0 0.0
        %1144 = vmatpush1.msra.mxu0 0.0
        %1145 = vmatprep.subr.mxu0 0.0
        %1146 = vmatpush1.msra.mxu0 0.0
        %1147 = vmatprep.subr.mxu0 0.0
        %1148 = vmatpush1.msra.mxu0 0.0
        %1149 = vmatprep.subr.mxu0 0.0
        %1150 = vmatpush1.msra.mxu0 0.0
        %1151 = vmatprep.subr.mxu0 0.0
        %1152 = vmatpush1.msra.mxu0 0.0
        %1153 = vmatprep.subr.mxu0 0.0
        %1154 = vmatpush1.msra.mxu0 0.0
        %1155 = vmatprep.subr.mxu0 0.0
        %1156 = vmatpush1.msra.mxu0 0.0
        %1157 = vmatprep.subr.mxu0 0.0
        %1158 = vmatpush1.msra.mxu0 0.0
        %1159 = vmatprep.subr.mxu0 0.0
        %1160 = vmatpush1.msra.mxu0 0.0
        %1161 = vmatprep.subr.mxu0 0.0
        %1162 = vmatpush1.msra.mxu0 0.0
        %1163 = vmatprep.subr.mxu0 0.0
        %1164 = vmatpush1.msra.mxu0 0.0
        %1165 = vmatprep.subr.mxu0 0.0
        %1166 = vmatpush1.msra.mxu0 0.0
        %1167 = vmatprep.subr.mxu0 0.0
        %1168 = vmatpush1.msra.mxu0 0.0
        %1169 = vmatprep.subr.mxu0 0.0
        %1170 = vmatpush1.msra.mxu0 0.0
        %1171 = vmatprep.subr.mxu0 0.0
        %1172 = vmatpush1.msra.mxu0 0.0
        %1173 = vmatprep.subr.mxu0 0.0
        %1174 = vmatpush1.msra.mxu0 0.0
        %1175 = vmatprep.subr.mxu0 0.0
        %1176 = vmatpush1.msra.mxu0 0.0
        %1177 = vmatprep.subr.mxu0 0.0
        %1178 = vmatpush1.msra.mxu0 0.0
        %1179 = vmatprep.subr.mxu0 0.0
        %1180 = vmatpush1.msra.mxu0 0.0
        %1181 = vmatprep.subr.mxu0 0.0
        %1182 = vmatpush1.msra.mxu0 0.0
        %1183 = vmatprep.mubr.f32.mxu0 0.0
        %1184 = vmatmul.mubr.f32.gmra.mrb[0].mxu0 %v970
        %v1185 = vpop.f32.mrb[0].mxu0
        %v1186 = vadd.f32 0.0, %v1185
        %v1187 = vpop.f32.mrb[0].mxu0
        %1188 = vmatprep.mubr.f32.mxu0 0.0
        %1189 = vmatmul.mubr.f32.gmra.mrb[0].mxu0 %v973
        %v1190 = vpop.f32.mrb[0].mxu0
        %v1191 = vadd.f32 0.0, %v1190
        %v1192 = vpop.f32.mrb[0].mxu0
        %1193 = vmatprep.mubr.f32.mxu0 0.0
        %1194 = vmatmul.mubr.f32.gmra.mrb[0].mxu0 %v976
        %v1195 = vpop.f32.mrb[0].mxu0
        %v1196 = vadd.f32 0.0, %v1195
        %v1197 = vpop.f32.mrb[0].mxu0
        %1198 = vmatprep.mubr.f32.mxu0 0.0
        %1199 = vmatmul.mubr.f32.gmra.mrb[0].mxu0 %v979
        %v1200 = vpop.f32.mrb[0].mxu0
        %v1201 = vadd.f32 0.0, %v1200
        %v1202 = vpop.f32.mrb[0].mxu0
        %1203 = vmatprep.mubr.f32.mxu0 0.0
        %1204 = vmatmul.mubr.f32.gmra.mrb[0].mxu0 %v982
        %v1205 = vpop.f32.mrb[0].mxu0
        %v1206 = vadd.f32 0.0, %v1205
        %v1207 = vpop.f32.mrb[0].mxu0
        %1208 = vmatprep.mubr.f32.mxu0 0.0
        %1209 = vmatmul.mubr.f32.gmra.mrb[0].mxu0 %v985
        %v1210 = vpop.f32.mrb[0].mxu0
        %v1211 = vadd.f32 0.0, %v1210
        %v1212 = vpop.f32.mrb[0].mxu0
        %1213 = vmatprep.mubr.f32.mxu0 0.0
        %1214 = vmatmul.mubr.f32.gmra.mrb[0].mxu0 %v988
        %v1215 = vpop.f32.mrb[0].mxu0
        %v1216 = vadd.f32 0.0, %v1215
        %v1217 = vpop.f32.mrb[0].mxu0
        %1218 = vmatprep.mubr.f32.mxu0 0.0
        %1219 = vmatmul.mubr.f32.gmra.mrb[0].mxu0 %v1117
        %v1220 = vpop.f32.mrb[0].mxu0
        %v1221 = vadd.f32 0.0, %v1220
        %v1222 = vpop.f32.mrb[0].mxu0
        %1223 = vdwg.mxu0
        %v1224 = vadd.f32 %v1095, %v1186
        %v1225 = vadd.f32 %v1096, %v1191
        %v1226 = vadd.f32 %v1097, %v1196
        %v1227 = vadd.f32 %v1098, %v1201
        %v1228 = vadd.f32 %v1099, %v1206
        %v1229 = vadd.f32 %v1100, %v1211
        %v1230 = vadd.f32 %v1101, %v1216
        %v1231 = vadd.f32 %v1102, %v1221
        %s1232 = scalar_lea.vmem %s5, 192
        %v1233 = vld [vmem:[%s1232] sm:$0xff]
        %v1234 = vld [vmem:[%s1232 + $0x8] sm:$0xff]
        %v1235 = vld [vmem:[%s1232 + $0x10] sm:$0xff]
        %v1236 = vld [vmem:[%s1232 + $0x18] sm:$0xff]
        %v1237 = vld [vmem:[%s1232 + $0x20] sm:$0xff]
        %v1238 = vld [vmem:[%s1232 + $0x28] sm:$0xff]
        %v1239 = vld [vmem:[%s1232 + $0x30] sm:$0xff]
        %v1240 = vld [vmem:[%s1232 + $0x38] sm:$0xff]
        %v1241 = vld [vmem:[%s1232 + $0x40] sm:$0xff]
        %v1242 = vld [vmem:[%s1232 + $0x48] sm:$0xff]
        %v1243 = vld [vmem:[%s1232 + $0x50] sm:$0xff]
        %v1244 = vld [vmem:[%s1232 + $0x58] sm:$0xff]
        %v1246 = vsel %vm965, %v946, 0
        %1248 = vmatprep.subr.mxu0 0.0
        %1249 = vmatpush1.msra.mxu0 %v1233
        %1250 = vmatprep.subr.mxu0 0.0
        %1251 = vmatpush1.msra.mxu0 %v1234
        %1252 = vmatprep.subr.mxu0 0.0
        %1253 = vmatpush1.msra.mxu0 %v1235
        %1254 = vmatprep.subr.mxu0 0.0
        %1255 = vmatpush1.msra.mxu0 %v1236
        %1256 = vmatprep.subr.mxu0 0.0
        %1257 = vmatpush1.msra.mxu0 %v1237
        %1258 = vmatprep.subr.mxu0 0.0
        %1259 = vmatpush1.msra.mxu0 %v1238
        %1260 = vmatprep.subr.mxu0 0.0
        %1261 = vmatpush1.msra.mxu0 %v1239
        %1262 = vmatprep.subr.mxu0 0.0
        %1263 = vmatpush1.msra.mxu0 %v1240
        %1264 = vmatprep.subr.mxu0 0.0
        %1265 = vmatpush1.msra.mxu0 %v1241
        %1266 = vmatprep.subr.mxu0 0.0
        %1267 = vmatpush1.msra.mxu0 %v1242
        %1268 = vmatprep.subr.mxu0 0.0
        %1269 = vmatpush1.msra.mxu0 %v1243
        %1270 = vmatprep.subr.mxu0 0.0
        %1271 = vmatpush1.msra.mxu0 %v1244
        %1272 = vmatprep.subr.mxu0 0.0
        %1273 = vmatpush1.msra.mxu0 0.0
        %1274 = vmatprep.subr.mxu0 0.0
        %1275 = vmatpush1.msra.mxu0 0.0
        %1276 = vmatprep.subr.mxu0 0.0
        %1277 = vmatpush1.msra.mxu0 0.0
        %1278 = vmatprep.subr.mxu0 0.0
        %1279 = vmatpush1.msra.mxu0 0.0
        %1280 = vmatprep.subr.mxu0 0.0
        %1281 = vmatpush1.msra.mxu0 0.0
        %1282 = vmatprep.subr.mxu0 0.0
        %1283 = vmatpush1.msra.mxu0 0.0
        %1284 = vmatprep.subr.mxu0 0.0
        %1285 = vmatpush1.msra.mxu0 0.0
        %1286 = vmatprep.subr.mxu0 0.0
        %1287 = vmatpush1.msra.mxu0 0.0
        %1288 = vmatprep.subr.mxu0 0.0
        %1289 = vmatpush1.msra.mxu0 0.0
        %1290 = vmatprep.subr.mxu0 0.0
        %1291 = vmatpush1.msra.mxu0 0.0
        %1292 = vmatprep.subr.mxu0 0.0
        %1293 = vmatpush1.msra.mxu0 0.0
        %1294 = vmatprep.subr.mxu0 0.0
        %1295 = vmatpush1.msra.mxu0 0.0
        %1296 = vmatprep.subr.mxu0 0.0
        %1297 = vmatpush1.msra.mxu0 0.0
        %1298 = vmatprep.subr.mxu0 0.0
        %1299 = vmatpush1.msra.mxu0 0.0
        %1300 = vmatprep.subr.mxu0 0.0
        %1301 = vmatpush1.msra.mxu0 0.0
        %1302 = vmatprep.subr.mxu0 0.0
        %1303 = vmatpush1.msra.mxu0 0.0
        %1304 = vmatprep.subr.mxu0 0.0
        %1305 = vmatpush1.msra.mxu0 0.0
        %1306 = vmatprep.subr.mxu0 0.0
        %1307 = vmatpush1.msra.mxu0 0.0
        %1308 = vmatprep.subr.mxu0 0.0
        %1309 = vmatpush1.msra.mxu0 0.0
        %1310 = vmatprep.subr.mxu0 0.0
        %1311 = vmatpush1.msra.mxu0 0.0
        %1312 = vmatprep.mubr.f32.mxu0 0.0
        %1313 = vmatmul.mubr.f32.gmra.mrb[0].mxu0 %v973
        %v1314 = vpop.f32.mrb[0].mxu0
        %v1315 = vadd.f32 0.0, %v1314
        %v1316 = vpop.f32.mrb[0].mxu0
        %1317 = vmatprep.mubr.f32.mxu0 0.0
        %1318 = vmatmul.mubr.f32.gmra.mrb[0].mxu0 %v976
        %v1319 = vpop.f32.mrb[0].mxu0
        %v1320 = vadd.f32 0.0, %v1319
        %v1321 = vpop.f32.mrb[0].mxu0
        %1322 = vmatprep.mubr.f32.mxu0 0.0
        %1323 = vmatmul.mubr.f32.gmra.mrb[0].mxu0 %v979
        %v1324 = vpop.f32.mrb[0].mxu0
        %v1325 = vadd.f32 0.0, %v1324
        %v1326 = vpop.f32.mrb[0].mxu0
        %1327 = vmatprep.mubr.f32.mxu0 0.0
        %1328 = vmatmul.mubr.f32.gmra.mrb[0].mxu0 %v982
        %v1329 = vpop.f32.mrb[0].mxu0
        %v1330 = vadd.f32 0.0, %v1329
        %v1331 = vpop.f32.mrb[0].mxu0
        %1332 = vmatprep.mubr.f32.mxu0 0.0
        %1333 = vmatmul.mubr.f32.gmra.mrb[0].mxu0 %v985
        %v1334 = vpop.f32.mrb[0].mxu0
        %v1335 = vadd.f32 0.0, %v1334
        %v1336 = vpop.f32.mrb[0].mxu0
        %1337 = vmatprep.mubr.f32.mxu0 0.0
        %1338 = vmatmul.mubr.f32.gmra.mrb[0].mxu0 %v988
        %v1339 = vpop.f32.mrb[0].mxu0
        %v1340 = vadd.f32 0.0, %v1339
        %v1341 = vpop.f32.mrb[0].mxu0
        %1342 = vmatprep.mubr.f32.mxu0 0.0
        %1343 = vmatmul.mubr.f32.gmra.mrb[0].mxu0 %v1117
        %v1344 = vpop.f32.mrb[0].mxu0
        %v1345 = vadd.f32 0.0, %v1344
        %v1346 = vpop.f32.mrb[0].mxu0
        %1347 = vmatprep.mubr.f32.mxu0 0.0
        %1348 = vmatmul.mubr.f32.gmra.mrb[0].mxu0 %v1246
        %v1349 = vpop.f32.mrb[0].mxu0
        %v1350 = vadd.f32 0.0, %v1349
        %v1351 = vpop.f32.mrb[0].mxu0
        %1352 = vdwg.mxu0
        %v1353 = vadd.f32 %v1224, %v1315
        %v1354 = vadd.f32 %v1225, %v1320
        %v1355 = vadd.f32 %v1226, %v1325
        %v1356 = vadd.f32 %v1227, %v1330
        %v1357 = vadd.f32 %v1228, %v1335
        %v1358 = vadd.f32 %v1229, %v1340
        %v1359 = vadd.f32 %v1230, %v1345
        %v1360 = vadd.f32 %v1231, %v1350
        %v1361 = vld [vmem:[%s533] sm:$0x1]
        %v1362 = vxor.u32 %v1361, 2147483648
        %v1363 = vmul.f32 %v1362, 1.442695
        %v1364 = vpow.pop %v1363
        %v1365 = vadd.f32 %v1364, 1.0
        %v1366 = vrcp.pop %v1365
        %v1367 = vmul.f32 1.0, %v1366
        %v1368 = vmul.f32 %v1361, %v1367
        %v1369 = vld [vmem:[%s7] sm:$0xff]
        %v1370 = vld [vmem:[%s7 + $0x8] sm:$0xff]
        %v1371 = vld [vmem:[%s7 + $0x10] sm:$0xff]
        %v1372 = vld [vmem:[%s7 + $0x18] sm:$0xff]
        %v1373 = vld [vmem:[%s7 + $0x20] sm:$0xff]
        %v1374 = vld [vmem:[%s7 + $0x28] sm:$0xff]
        %v1375 = vld [vmem:[%s8] sm:$0x1]
        %vm1376 = vcmask 392192
        %v1378 = vsel %vm1376, %v1368, 0
        %1380 = vmatprep.subr.mxu0 0.0
        %1381 = vmatpush1.msra.mxu0 %v1369
        %1382 = vmatprep.subr.mxu0 0.0
        %1383 = vmatpush1.msra.mxu0 %v1370
        %1384 = vmatprep.subr.mxu0 0.0
        %1385 = vmatpush1.msra.mxu0 %v1371
        %1386 = vmatprep.subr.mxu0 0.0
        %1387 = vmatpush1.msra.mxu0 %v1372
        %1388 = vmatprep.subr.mxu0 0.0
        %1389 = vmatpush1.msra.mxu0 %v1373
        %1390 = vmatprep.subr.mxu0 0.0
        %1391 = vmatpush1.msra.mxu0 %v1374
        %1392 = vmatprep.subr.mxu0 0.0
        %1393 = vmatpush1.msra.mxu0 0.0
        %1394 = vmatprep.subr.mxu0 0.0
        %1395 = vmatpush1.msra.mxu0 0.0
        %1396 = vmatprep.subr.mxu0 0.0
        %1397 = vmatpush1.msra.mxu0 0.0
        %1398 = vmatprep.subr.mxu0 0.0
        %1399 = vmatpush1.msra.mxu0 0.0
        %1400 = vmatprep.subr.mxu0 0.0
        %1401 = vmatpush1.msra.mxu0 0.0
        %1402 = vmatprep.subr.mxu0 0.0
        %1403 = vmatpush1.msra.mxu0 0.0
        %1404 = vmatprep.subr.mxu0 0.0
        %1405 = vmatpush1.msra.mxu0 0.0
        %1406 = vmatprep.subr.mxu0 0.0
        %1407 = vmatpush1.msra.mxu0 0.0
        %1408 = vmatprep.subr.mxu0 0.0
        %1409 = vmatpush1.msra.mxu0 0.0
        %1410 = vmatprep.subr.mxu0 0.0
        %1411 = vmatpush1.msra.mxu0 0.0
        %1412 = vmatprep.subr.mxu0 0.0
        %1413 = vmatpush1.msra.mxu0 0.0
        %1414 = vmatprep.subr.mxu0 0.0
        %1415 = vmatpush1.msra.mxu0 0.0
        %1416 = vmatprep.subr.mxu0 0.0
        %1417 = vmatpush1.msra.mxu0 0.0
        %1418 = vmatprep.subr.mxu0 0.0
        %1419 = vmatpush1.msra.mxu0 0.0
        %1420 = vmatprep.subr.mxu0 0.0
        %1421 = vmatpush1.msra.mxu0 0.0
        %1422 = vmatprep.subr.mxu0 0.0
        %1423 = vmatpush1.msra.mxu0 0.0
        %1424 = vmatprep.subr.mxu0 0.0
        %1425 = vmatpush1.msra.mxu0 0.0
        %1426 = vmatprep.subr.mxu0 0.0
        %1427 = vmatpush1.msra.mxu0 0.0
        %1428 = vmatprep.subr.mxu0 0.0
        %1429 = vmatpush1.msra.mxu0 0.0
        %1430 = vmatprep.subr.mxu0 0.0
        %1431 = vmatpush1.msra.mxu0 0.0
        %1432 = vmatprep.subr.mxu0 0.0
        %1433 = vmatpush1.msra.mxu0 0.0
        %1434 = vmatprep.subr.mxu0 0.0
        %1435 = vmatpush1.msra.mxu0 0.0
        %1436 = vmatprep.subr.mxu0 0.0
        %1437 = vmatpush1.msra.mxu0 0.0
        %1438 = vmatprep.subr.mxu0 0.0
        %1439 = vmatpush1.msra.mxu0 0.0
        %1440 = vmatprep.subr.mxu0 0.0
        %1441 = vmatpush1.msra.mxu0 0.0
        %1442 = vmatprep.subr.mxu0 0.0
        %1443 = vmatpush1.msra.mxu0 0.0
        %1444 = vmatprep.mubr.f32.mxu0 0.0
        %1445 = vmatmul.mubr.f32.gmra.mrb[0].mxu0 %v1378
        %v1446 = vpop.f32.mrb[0].mxu0
        %v1447 = vadd.f32 %v1375, %v1446
        %v1448 = vpop.f32.mrb[0].mxu0
        %1449 = vdwg.mxu0
        %v1450 = vld [vmem:[%s9] sm:$0xff]
        %v1451 = vld [vmem:[%s9 + $0x8] sm:$0xff]
        %v1452 = vld [vmem:[%s9 + $0x10] sm:$0xff]
        %v1453 = vld [vmem:[%s9 + $0x18] sm:$0xff]
        %v1454 = vld [vmem:[%s9 + $0x20] sm:$0xff]
        %v1455 = vld [vmem:[%s9 + $0x28] sm:$0xff]
        %v1456 = vld [vmem:[%s9 + $0x30] sm:$0xff]
        %v1457 = vld [vmem:[%s9 + $0x38] sm:$0xff]
        %v1458 = vld [vmem:[%s10] sm:$0x1]
        %v1459 = vld [vmem:[%s11] sm:$0x1]
        %v1460 = vsel %vm936, %v1353, 0.0
        %v1461 = vsel %vm936, %v1354, 0.0
        %v1462 = vadd.f32 %v1460, %v1461
        %v1463 = vsel %vm936, %v1355, 0.0
        %v1464 = vadd.f32 %v1462, %v1463
        %v1465 = vsel %vm936, %v1356, 0.0
        %v1466 = vadd.f32 %v1464, %v1465
        %v1467 = vsel %vm936, %v1357, 0.0
        %v1468 = vadd.f32 %v1466, %v1467
        %v1469 = vsel %vm936, %v1358, 0.0
        %v1470 = vadd.f32 %v1468, %v1469
        %v1471 = vsel %vm936, %v1359, 0.0
        %v1472 = vadd.f32 %v1470, %v1471
        %v1473 = vsel %vm936, %v1360, 0.0
        %v1474 = vadd.f32 %v1472, %v1473
        %v1475 = vrot.slane %v1474, 4
        %v1476 = vadd.f32 %v1474, %v1475
        %v1477 = vrot.slane %v1476, 2
        %v1478 = vadd.f32 %v1476, %v1477
        %v1479 = vrot.slane %v1478, 1
        %v1480 = vadd.f32 %v1478, %v1479
        %v1481 = vmul.f32 %v1353, %v1353
        %v1482 = vmul.f32 %v1354, %v1354
        %v1483 = vmul.f32 %v1355, %v1355
        %v1484 = vmul.f32 %v1356, %v1356
        %v1485 = vmul.f32 %v1357, %v1357
        %v1486 = vmul.f32 %v1358, %v1358
        %v1487 = vmul.f32 %v1359, %v1359
        %v1488 = vmul.f32 %v1360, %v1360
        %v1489 = vsel %vm936, %v1481, 0.0
        %v1490 = vsel %vm936, %v1482, 0.0
        %v1491 = vadd.f32 %v1489, %v1490
        %v1492 = vsel %vm936, %v1483, 0.0
        %v1493 = vadd.f32 %v1491, %v1492
        %v1494 = vsel %vm936, %v1484, 0.0
        %v1495 = vadd.f32 %v1493, %v1494
        %v1496 = vsel %vm936, %v1485, 0.0
        %v1497 = vadd.f32 %v1495, %v1496
        %v1498 = vsel %vm936, %v1486, 0.0
        %v1499 = vadd.f32 %v1497, %v1498
        %v1500 = vsel %vm936, %v1487, 0.0
        %v1501 = vadd.f32 %v1499, %v1500
        %v1502 = vsel %vm936, %v1488, 0.0
        %v1503 = vadd.f32 %v1501, %v1502
        %v1504 = vrot.slane %v1503, 4
        %v1505 = vadd.f32 %v1503, %v1504
        %v1506 = vrot.slane %v1505, 2
        %v1507 = vadd.f32 %v1505, %v1506
        %v1508 = vrot.slane %v1507, 1
        %v1509 = vadd.f32 %v1507, %v1508
        %v1510 = vsel %vm599, %v1480, %v1509
        %v1512 = vsel %vm936, %v1510, 0
        %1514 = vmatprep.subr.mxu0 0.0
        %1515 = vmatpush1.msra.mxu0 %v1450
        %1516 = vmatprep.subr.mxu0 0.0
        %1517 = vmatpush1.msra.mxu0 %v1451
        %1518 = vmatprep.subr.mxu0 0.0
        %1519 = vmatpush1.msra.mxu0 %v1452
        %1520 = vmatprep.subr.mxu0 0.0
        %1521 = vmatpush1.msra.mxu0 %v1453
        %1522 = vmatprep.subr.mxu0 0.0
        %1523 = vmatpush1.msra.mxu0 %v1454
        %1524 = vmatprep.subr.mxu0 0.0
        %1525 = vmatpush1.msra.mxu0 %v1455
        %1526 = vmatprep.subr.mxu0 0.0
        %1527 = vmatpush1.msra.mxu0 %v1456
        %1528 = vmatprep.subr.mxu0 0.0
        %1529 = vmatpush1.msra.mxu0 %v1457
        %1530 = vmatprep.subr.mxu0 0.0
        %1531 = vmatpush1.msra.mxu0 0.0
        %1532 = vmatprep.subr.mxu0 0.0
        %1533 = vmatpush1.msra.mxu0 0.0
        %1534 = vmatprep.subr.mxu0 0.0
        %1535 = vmatpush1.msra.mxu0 0.0
        %1536 = vmatprep.subr.mxu0 0.0
        %1537 = vmatpush1.msra.mxu0 0.0
        %1538 = vmatprep.subr.mxu0 0.0
        %1539 = vmatpush1.msra.mxu0 0.0
        %1540 = vmatprep.subr.mxu0 0.0
        %1541 = vmatpush1.msra.mxu0 0.0
        %1542 = vmatprep.subr.mxu0 0.0
        %1543 = vmatpush1.msra.mxu0 0.0
        %1544 = vmatprep.subr.mxu0 0.0
        %1545 = vmatpush1.msra.mxu0 0.0
        %1546 = vmatprep.subr.mxu0 0.0
        %1547 = vmatpush1.msra.mxu0 0.0
        %1548 = vmatprep.subr.mxu0 0.0
        %1549 = vmatpush1.msra.mxu0 0.0
        %1550 = vmatprep.subr.mxu0 0.0
        %1551 = vmatpush1.msra.mxu0 0.0
        %1552 = vmatprep.subr.mxu0 0.0
        %1553 = vmatpush1.msra.mxu0 0.0
        %1554 = vmatprep.subr.mxu0 0.0
        %1555 = vmatpush1.msra.mxu0 0.0
        %1556 = vmatprep.subr.mxu0 0.0
        %1557 = vmatpush1.msra.mxu0 0.0
        %1558 = vmatprep.subr.mxu0 0.0
        %1559 = vmatpush1.msra.mxu0 0.0
        %1560 = vmatprep.subr.mxu0 0.0
        %1561 = vmatpush1.msra.mxu0 0.0
        %1562 = vmatprep.subr.mxu0 0.0
        %1563 = vmatpush1.msra.mxu0 0.0
        %1564 = vmatprep.subr.mxu0 0.0
        %1565 = vmatpush1.msra.mxu0 0.0
        %1566 = vmatprep.subr.mxu0 0.0
        %1567 = vmatpush1.msra.mxu0 0.0
        %1568 = vmatprep.subr.mxu0 0.0
        %1569 = vmatpush1.msra.mxu0 0.0
        %1570 = vmatprep.subr.mxu0 0.0
        %1571 = vmatpush1.msra.mxu0 0.0
        %1572 = vmatprep.subr.mxu0 0.0
        %1573 = vmatpush1.msra.mxu0 0.0
        %1574 = vmatprep.subr.mxu0 0.0
        %1575 = vmatpush1.msra.mxu0 0.0
        %1576 = vmatprep.subr.mxu0 0.0
        %1577 = vmatpush1.msra.mxu0 0.0
        %1578 = vmatprep.mubr.f32.mxu0 0.0
        %1579 = vmatmul.mubr.f32.gmra.mrb[0].mxu0 %v1512
        %v1580 = vpop.f32.mrb[0].mxu0
        %v1581 = vadd.f32 0.0, %v1580
        %v1582 = vpop.f32.mrb[0].mxu0
        %1583 = vdwg.mxu0
        %v1584 = vmul.f32 %v1581, %v1581
        %v1586 = vrot.slane %v1584, 7
        %v1588 = vsub.f32 %v1581, %v1586
        %v1589 = vmax.f32 %v1588, 0.0
        %v1590 = vadd.f32 %v1589, 1e-05
        %v1591 = vrsqrt.pop %v1590
        %v1592 = vlaneseq
        %v1593 = vshrl.u32 %v1592, 7
        %v1594 = vsub.s32 0, %v1593
        %v1595 = vrot.slane %v1581, %v1594
        %v1596 = vsub.f32 %v1353, %v1595
        %v1597 = vsub.f32 %v1354, %v1595
        %v1598 = vsub.f32 %v1355, %v1595
        %v1599 = vsub.f32 %v1356, %v1595
        %v1600 = vsub.f32 %v1357, %v1595
        %v1601 = vsub.f32 %v1358, %v1595
        %v1602 = vsub.f32 %v1359, %v1595
        %v1603 = vsub.f32 %v1360, %v1595
        %v1605 = vlaneseq
        %v1606 = vshrl.u32 %v1605, 7
        %v1607 = vsub.s32 0, %v1606
        %v1608 = vrot.slane %v1458, %v1607
        %v1610 = vmul.f32 %v1591, %v1608
        %v1611 = vlaneseq
        %v1612 = vshrl.u32 %v1611, 7
        %v1613 = vsub.s32 1, %v1612
        %v1614 = vrot.slane %v1610, %v1613
        %v1615 = vmul.f32 %v1596, %v1614
        %v1616 = vmul.f32 %v1597, %v1614
        %v1617 = vmul.f32 %v1598, %v1614
        %v1618 = vmul.f32 %v1599, %v1614
        %v1619 = vmul.f32 %v1600, %v1614
        %v1620 = vmul.f32 %v1601, %v1614
        %v1621 = vmul.f32 %v1602, %v1614
        %v1622 = vmul.f32 %v1603, %v1614
        %v1624 = vlaneseq
        %v1625 = vshrl.u32 %v1624, 7
        %v1626 = vsub.s32 0, %v1625
        %v1627 = vrot.slane %v1459, %v1626
        %v1629 = vadd.f32 %v1615, %v1627
        %v1630 = vadd.f32 %v1616, %v1627
        %v1631 = vadd.f32 %v1617, %v1627
        %v1632 = vadd.f32 %v1618, %v1627
        %v1633 = vadd.f32 %v1619, %v1627
        %v1634 = vadd.f32 %v1620, %v1627
        %v1635 = vadd.f32 %v1621, %v1627
        %v1636 = vadd.f32 %v1622, %v1627
        %v1637 = vadd.f32 %v1447, 1.0
        %v1638 = vlaneseq
        %v1639 = vshrl.u32 %v1638, 7
        %v1640 = vsub.s32 0, %v1639
        %v1641 = vrot.slane %v1637, %v1640
        %v1642 = vmul.f32 %v1629, %v1641
        %v1643 = vmul.f32 %v1630, %v1641
        %v1644 = vmul.f32 %v1631, %v1641
        %v1645 = vmul.f32 %v1632, %v1641
        %v1646 = vmul.f32 %v1633, %v1641
        %v1647 = vmul.f32 %v1634, %v1641
        %v1648 = vmul.f32 %v1635, %v1641
        %v1649 = vmul.f32 %v1636, %v1641
        %v1650 = vlaneseq
        %v1651 = vshrl.u32 %v1650, 7
        %v1652 = vsub.s32 0, %v1651
        %v1653 = vrot.slane %v1447, %v1652
        %1655 = vrot.lane.b32.xlu0 %v1653, 64
        %v1656 = vpop.permute.xlu0 %1655
        %v1658 = vadd.f32 %v1642, %v1656
        %v1659 = vadd.f32 %v1643, %v1656
        %v1660 = vadd.f32 %v1644, %v1656
        %v1661 = vadd.f32 %v1645, %v1656
        %v1662 = vadd.f32 %v1646, %v1656
        %v1663 = vadd.f32 %v1647, %v1656
        %v1664 = vadd.f32 %v1648, %v1656
        %v1665 = vadd.f32 %v1649, %v1656
        %v1666 = vxor.u32 %v1658, 2147483648
        %v1667 = vxor.u32 %v1659, 2147483648
        %v1668 = vxor.u32 %v1660, 2147483648
        %v1669 = vxor.u32 %v1661, 2147483648
        %v1670 = vxor.u32 %v1662, 2147483648
        %v1671 = vxor.u32 %v1663, 2147483648
        %v1672 = vxor.u32 %v1664, 2147483648
        %v1673 = vxor.u32 %v1665, 2147483648
        %v1674 = vmul.f32 %v1666, 1.442695
        %v1675 = vpow.pop %v1674
        %v1676 = vmul.f32 %v1667, 1.442695
        %v1677 = vpow.pop %v1676
        %v1678 = vmul.f32 %v1668, 1.442695
        %v1679 = vpow.pop %v1678
        %v1680 = vmul.f32 %v1669, 1.442695
        %v1681 = vpow.pop %v1680
        %v1682 = vmul.f32 %v1670, 1.442695
        %v1683 = vpow.pop %v1682
        %v1684 = vmul.f32 %v1671, 1.442695
        %v1685 = vpow.pop %v1684
        %v1686 = vmul.f32 %v1672, 1.442695
        %v1687 = vpow.pop %v1686
        %v1688 = vmul.f32 %v1673, 1.442695
        %v1689 = vpow.pop %v1688
        %v1690 = vadd.f32 %v1675, 1.0
        %v1691 = vadd.f32 %v1677, 1.0
        %v1692 = vadd.f32 %v1679, 1.0
        %v1693 = vadd.f32 %v1681, 1.0
        %v1694 = vadd.f32 %v1683, 1.0
        %v1695 = vadd.f32 %v1685, 1.0
        %v1696 = vadd.f32 %v1687, 1.0
        %v1697 = vadd.f32 %v1689, 1.0
        %v1698 = vrcp.pop %v1690
        %v1699 = vmul.f32 1.0, %v1698
        %v1700 = vrcp.pop %v1691
        %v1701 = vmul.f32 1.0, %v1700
        %v1702 = vrcp.pop %v1692
        %v1703 = vmul.f32 1.0, %v1702
        %v1704 = vrcp.pop %v1693
        %v1705 = vmul.f32 1.0, %v1704
        %v1706 = vrcp.pop %v1694
        %v1707 = vmul.f32 1.0, %v1706
        %v1708 = vrcp.pop %v1695
        %v1709 = vmul.f32 1.0, %v1708
        %v1710 = vrcp.pop %v1696
        %v1711 = vmul.f32 1.0, %v1710
        %v1712 = vrcp.pop %v1697
        %v1713 = vmul.f32 1.0, %v1712
        %v1714 = vmul.f32 %v1658, %v1699
        %v1715 = vmul.f32 %v1659, %v1701
        %v1716 = vmul.f32 %v1660, %v1703
        %v1717 = vmul.f32 %v1661, %v1705
        %v1718 = vmul.f32 %v1662, %v1707
        %v1719 = vmul.f32 %v1663, %v1709
        %v1720 = vmul.f32 %v1664, %v1711
        %v1721 = vmul.f32 %v1665, %v1713
        %s1722 = scalar_lea.vmem [#allocation3], 16
        %1723 = vst.msk [vmem:[%s1722 + $0x1] sm:$0xff] %vm936, %v1714
        %1724 = vst.msk [vmem:[%s1722 + $0x11] sm:$0xff] %vm936, %v1715
        %1725 = vst.msk [vmem:[%s1722 + $0x21] sm:$0xff] %vm936, %v1716
        %1726 = vst.msk [vmem:[%s1722 + $0x31] sm:$0xff] %vm936, %v1717
        %1727 = vst.msk [vmem:[%s1722 + $0x41] sm:$0xff] %vm936, %v1718
        %1728 = vst.msk [vmem:[%s1722 + $0x51] sm:$0xff] %vm936, %v1719
        %1729 = vst.msk [vmem:[%s1722 + $0x61] sm:$0xff] %vm936, %v1720
        %1730 = vst.msk [vmem:[%s1722 + $0x71] sm:$0xff] %vm936, %v1721
        %1731 = vst.msk [vmem:[#allocation3] sm:$0xff] %vm936, 0.0
        %vm1732 = vcmask 517120
        %1733 = vst.msk [vmem:[#allocation3 + $0x8] sm:$0x3] %vm1732, 0.0
        %s1734 = scalar_lea.vmem [#allocation3], 144
        %1735 = vst.msk [vmem:[%s1734] sm:$0xff] %vm936, 0.0
        %1736 = vst.msk [vmem:[%s1734 + $0x8] sm:$0x3] %vm1732, 0.0
        %vm1737 = vcmask 516096
        %1738 = vst.msk [vmem:[%s1722] sm:$0x1] %vm1737, 0.0
        %1739 = vst.msk [vmem:[%s1722 + $0x10] sm:$0x1] %vm1737, 0.0
        %1740 = vst.msk [vmem:[%s1722 + $0x20] sm:$0x1] %vm1737, 0.0
        %1741 = vst.msk [vmem:[%s1722 + $0x30] sm:$0x1] %vm1737, 0.0
        %1742 = vst.msk [vmem:[%s1722 + $0x40] sm:$0x1] %vm1737, 0.0
        %1743 = vst.msk [vmem:[%s1722 + $0x50] sm:$0x1] %vm1737, 0.0
        %1744 = vst.msk [vmem:[%s1722 + $0x60] sm:$0x1] %vm1737, 0.0
        %1745 = vst.msk [vmem:[%s1722 + $0x70] sm:$0x1] %vm1737, 0.0
        %1746 = vst.msk [vmem:[%s1722 + $0x9] sm:$0x1] %vm1737, 0.0
        %1747 = vst.msk [vmem:[%s1722 + $0x19] sm:$0x1] %vm1737, 0.0
        %1748 = vst.msk [vmem:[%s1722 + $0x29] sm:$0x1] %vm1737, 0.0
        %1749 = vst.msk [vmem:[%s1722 + $0x39] sm:$0x1] %vm1737, 0.0
        %1750 = vst.msk [vmem:[%s1722 + $0x49] sm:$0x1] %vm1737, 0.0
        %1751 = vst.msk [vmem:[%s1722 + $0x59] sm:$0x1] %vm1737, 0.0
        %1752 = vst.msk [vmem:[%s1722 + $0x69] sm:$0x1] %vm1737, 0.0
        %1753 = vst.msk [vmem:[%s1722 + $0x79] sm:$0x1] %vm1737, 0.0
        %v1754 = vld [vmem:[%s13] sm:$0x1]
        %v1755 = vld [vmem:[#allocation3] sm:$0xff]
        %v1756 = vld [vmem:[#allocation3 + $0x10] sm:$0xff]
        %v1757 = vld [vmem:[#allocation3 + $0x20] sm:$0xff]
        %v1758 = vld [vmem:[#allocation3 + $0x30] sm:$0xff]
        %v1759 = vld [vmem:[#allocation3 + $0x40] sm:$0xff]
        %v1760 = vld [vmem:[#allocation3 + $0x50] sm:$0xff]
        %v1761 = vld [vmem:[#allocation3 + $0x60] sm:$0xff]
        %v1762 = vld [vmem:[#allocation3 + $0x70] sm:$0xff]
        %v1763 = vld [vmem:[#allocation3 + $0x80] sm:$0xff]
        %v1764 = vld [vmem:[#allocation3 + $0x90] sm:$0xff]
        %v1765 = vld [vmem:[#allocation3 + $0x1] sm:$0xff]
        %v1766 = vld [vmem:[#allocation3 + $0x11] sm:$0xff]
        %v1767 = vld [vmem:[#allocation3 + $0x21] sm:$0xff]
        %v1768 = vld [vmem:[#allocation3 + $0x31] sm:$0xff]
        %v1769 = vld [vmem:[#allocation3 + $0x41] sm:$0xff]
        %v1770 = vld [vmem:[#allocation3 + $0x51] sm:$0xff]
        %v1771 = vld [vmem:[#allocation3 + $0x61] sm:$0xff]
        %v1772 = vld [vmem:[#allocation3 + $0x71] sm:$0xff]
        %v1773 = vld [vmem:[#allocation3 + $0x81] sm:$0xff]
        %v1774 = vld [vmem:[#allocation3 + $0x91] sm:$0xff]
        %v1775 = vld [vmem:[#allocation3 + $0x2] sm:$0xff]
        %v1776 = vld [vmem:[#allocation3 + $0x12] sm:$0xff]
        %v1777 = vld [vmem:[#allocation3 + $0x22] sm:$0xff]
        %v1778 = vld [vmem:[#allocation3 + $0x32] sm:$0xff]
        %v1779 = vld [vmem:[#allocation3 + $0x42] sm:$0xff]
        %v1780 = vld [vmem:[#allocation3 + $0x52] sm:$0xff]
        %v1781 = vld [vmem:[#allocation3 + $0x62] sm:$0xff]
        %v1782 = vld [vmem:[#allocation3 + $0x72] sm:$0xff]
        %v1783 = vld [vmem:[#allocation3 + $0x82] sm:$0xff]
        %v1784 = vld [vmem:[#allocation3 + $0x92] sm:$0xff]
        %1795 = vrot.lane.b32.xlu0 %v1765, 64
        %v1796 = vpop.permute.xlu0 %1795
        %1797 = vrot.lane.b32.xlu0 %v1766, 64
        %v1798 = vpop.permute.xlu0 %1797
        %1799 = vrot.lane.b32.xlu0 %v1767, 64
        %v1800 = vpop.permute.xlu0 %1799
        %1801 = vrot.lane.b32.xlu0 %v1768, 64
        %v1802 = vpop.permute.xlu0 %1801
        %1803 = vrot.lane.b32.xlu0 %v1769, 64
        %v1804 = vpop.permute.xlu0 %1803
        %1805 = vrot.lane.b32.xlu0 %v1770, 64
        %v1806 = vpop.permute.xlu0 %1805
        %1807 = vrot.lane.b32.xlu0 %v1771, 64
        %v1808 = vpop.permute.xlu0 %1807
        %1809 = vrot.lane.b32.xlu0 %v1772, 64
        %v1810 = vpop.permute.xlu0 %1809
        %1811 = vrot.lane.b32.xlu0 %v1773, 64
        %v1812 = vpop.permute.xlu0 %1811
        %1813 = vrot.lane.b32.xlu0 %v1774, 64
        %v1814 = vpop.permute.xlu0 %1813
        %v1825 = vsel %vm936, %v1755, %v1796
        %v1826 = vsel %vm936, %v1756, %v1798
        %v1827 = vsel %vm936, %v1757, %v1800
        %v1828 = vsel %vm936, %v1758, %v1802
        %v1829 = vsel %vm936, %v1759, %v1804
        %v1830 = vsel %vm936, %v1760, %v1806
        %v1831 = vsel %vm936, %v1761, %v1808
        %v1832 = vsel %vm936, %v1762, %v1810
        %v1833 = vsel %vm936, %v1763, %v1812
        %v1834 = vsel %vm936, %v1764, %v1814
        %v1836 = vlaneseq
        %v1837 = vshrl.u32 %v1836, 7
        %v1838 = vsub.s32 0, %v1837
        %v1839 = vrot.slane %v1754, %v1838
        %v1841 = vld [vmem:[%s12] sm:$0xff]
        %v1842 = vld [vmem:[%s12 + $0x8] sm:$0xff]
        %v1843 = vld [vmem:[%s12 + $0x10] sm:$0xff]
        %v1844 = vld [vmem:[%s12 + $0x18] sm:$0xff]
        %v1845 = vld [vmem:[%s12 + $0x20] sm:$0xff]
        %v1846 = vld [vmem:[%s12 + $0x28] sm:$0xff]
        %v1847 = vld [vmem:[%s12 + $0x30] sm:$0xff]
        %v1848 = vld [vmem:[%s12 + $0x38] sm:$0xff]
        %v1849 = vld [vmem:[%s12 + $0x40] sm:$0xff]
        %v1850 = vld [vmem:[%s12 + $0x48] sm:$0xff]
        %v1851 = vld [vmem:[%s12 + $0x50] sm:$0xff]
        %v1852 = vld [vmem:[%s12 + $0x58] sm:$0xff]
        %v1853 = vld [vmem:[%s12 + $0x60] sm:$0xff]
        %v1854 = vld [vmem:[%s12 + $0x68] sm:$0xff]
        %v1855 = vld [vmem:[%s12 + $0x70] sm:$0xff]
        %v1856 = vld [vmem:[%s12 + $0x78] sm:$0xff]
        %v1857 = vld [vmem:[%s12 + $0x80] sm:$0xff]
        %v1858 = vld [vmem:[%s12 + $0x88] sm:$0xff]
        %v1859 = vld [vmem:[%s12 + $0x90] sm:$0xff]
        %v1860 = vld [vmem:[%s12 + $0x98] sm:$0xff]
        %v1861 = vld [vmem:[%s12 + $0xa0] sm:$0xff]
        %v1862 = vld [vmem:[%s12 + $0xa8] sm:$0xff]
        %v1863 = vld [vmem:[%s12 + $0xb0] sm:$0xff]
        %v1864 = vld [vmem:[%s12 + $0xb8] sm:$0xff]
        %v1866 = vsel %vm936, %v1775, 0
        %v1869 = vsel %vm936, %v1776, 0
        %v1872 = vsel %vm936, %v1777, 0
        %v1875 = vsel %vm936, %v1778, 0
        %v1878 = vsel %vm936, %v1779, 0
        %v1881 = vsel %vm936, %v1780, 0
        %v1884 = vsel %vm936, %v1781, 0
        %v1887 = vsel %vm936, %v1782, 0
        %1889 = vmatprep.subr.mxu0 0.0
        %1890 = vmatpush1.msra.mxu0 %v1841
        %1891 = vmatprep.subr.mxu0 0.0
        %1892 = vmatpush1.msra.mxu0 %v1842
        %1893 = vmatprep.subr.mxu0 0.0
        %1894 = vmatpush1.msra.mxu0 %v1843
        %1895 = vmatprep.subr.mxu0 0.0
        %1896 = vmatpush1.msra.mxu0 %v1844
        %1897 = vmatprep.subr.mxu0 0.0
        %1898 = vmatpush1.msra.mxu0 %v1845
        %1899 = vmatprep.subr.mxu0 0.0
        %1900 = vmatpush1.msra.mxu0 %v1846
        %1901 = vmatprep.subr.mxu0 0.0
        %1902 = vmatpush1.msra.mxu0 %v1847
        %1903 = vmatprep.subr.mxu0 0.0
        %1904 = vmatpush1.msra.mxu0 %v1848
        %1905 = vmatprep.subr.mxu0 0.0
        %1906 = vmatpush1.msra.mxu0 %v1849
        %1907 = vmatprep.subr.mxu0 0.0
        %1908 = vmatpush1.msra.mxu0 %v1850
        %1909 = vmatprep.subr.mxu0 0.0
        %1910 = vmatpush1.msra.mxu0 %v1851
        %1911 = vmatprep.subr.mxu0 0.0
        %1912 = vmatpush1.msra.mxu0 %v1852
        %1913 = vmatprep.subr.mxu0 0.0
        %1914 = vmatpush1.msra.mxu0 %v1853
        %1915 = vmatprep.subr.mxu0 0.0
        %1916 = vmatpush1.msra.mxu0 %v1854
        %1917 = vmatprep.subr.mxu0 0.0
        %1918 = vmatpush1.msra.mxu0 %v1855
        %1919 = vmatprep.subr.mxu0 0.0
        %1920 = vmatpush1.msra.mxu0 %v1856
        %1921 = vmatprep.subr.mxu0 0.0
        %1922 = vmatpush1.msra.mxu0 %v1857
        %1923 = vmatprep.subr.mxu0 0.0
        %1924 = vmatpush1.msra.mxu0 %v1858
        %1925 = vmatprep.subr.mxu0 0.0
        %1926 = vmatpush1.msra.mxu0 %v1859
        %1927 = vmatprep.subr.mxu0 0.0
        %1928 = vmatpush1.msra.mxu0 %v1860
        %1929 = vmatprep.subr.mxu0 0.0
        %1930 = vmatpush1.msra.mxu0 %v1861
        %1931 = vmatprep.subr.mxu0 0.0
        %1932 = vmatpush1.msra.mxu0 %v1862
        %1933 = vmatprep.subr.mxu0 0.0
        %1934 = vmatpush1.msra.mxu0 %v1863
        %1935 = vmatprep.subr.mxu0 0.0
        %1936 = vmatpush1.msra.mxu0 %v1864
        %1937 = vmatprep.subr.mxu0 0.0
        %1938 = vmatpush1.msra.mxu0 0.0
        %1939 = vmatprep.subr.mxu0 0.0
        %1940 = vmatpush1.msra.mxu0 0.0
        %1941 = vmatprep.subr.mxu0 0.0
        %1942 = vmatpush1.msra.mxu0 0.0
        %1943 = vmatprep.subr.mxu0 0.0
        %1944 = vmatpush1.msra.mxu0 0.0
        %1945 = vmatprep.subr.mxu0 0.0
        %1946 = vmatpush1.msra.mxu0 0.0
        %1947 = vmatprep.subr.mxu0 0.0
        %1948 = vmatpush1.msra.mxu0 0.0
        %1949 = vmatprep.subr.mxu0 0.0
        %1950 = vmatpush1.msra.mxu0 0.0
        %1951 = vmatprep.subr.mxu0 0.0
        %1952 = vmatpush1.msra.mxu0 0.0
        %1953 = vmatprep.mubr.f32.mxu0 %v1866
        %1954 = vmatmul.mubr.f32.gmra.mrb[0].mxu0 %v1825
        %v1955 = vpop.f32.mrb[0].mxu0
        %v1956 = vadd.f32 0.0, %v1955
        %v1957 = vpop.f32.mrb[0].mxu0
        %1958 = vmatprep.mubr.f32.mxu0 %v1869
        %1959 = vmatmul.mubr.f32.gmra.mrb[0].mxu0 %v1826
        %v1960 = vpop.f32.mrb[0].mxu0
        %v1961 = vadd.f32 0.0, %v1960
        %v1962 = vpop.f32.mrb[0].mxu0
        %1963 = vmatprep.mubr.f32.mxu0 %v1872
        %1964 = vmatmul.mubr.f32.gmra.mrb[0].mxu0 %v1827
        %v1965 = vpop.f32.mrb[0].mxu0
        %v1966 = vadd.f32 0.0, %v1965
        %v1967 = vpop.f32.mrb[0].mxu0
        %1968 = vmatprep.mubr.f32.mxu0 %v1875
        %1969 = vmatmul.mubr.f32.gmra.mrb[0].mxu0 %v1828
        %v1970 = vpop.f32.mrb[0].mxu0
        %v1971 = vadd.f32 0.0, %v1970
        %v1972 = vpop.f32.mrb[0].mxu0
        %1973 = vmatprep.mubr.f32.mxu0 %v1878
        %1974 = vmatmul.mubr.f32.gmra.mrb[0].mxu0 %v1829
        %v1975 = vpop.f32.mrb[0].mxu0
        %v1976 = vadd.f32 0.0, %v1975
        %v1977 = vpop.f32.mrb[0].mxu0
        %1978 = vmatprep.mubr.f32.mxu0 %v1881
        %1979 = vmatmul.mubr.f32.gmra.mrb[0].mxu0 %v1830
        %v1980 = vpop.f32.mrb[0].mxu0
        %v1981 = vadd.f32 0.0, %v1980
        %v1982 = vpop.f32.mrb[0].mxu0
        %1983 = vmatprep.mubr.f32.mxu0 %v1884
        %1984 = vmatmul.mubr.f32.gmra.mrb[0].mxu0 %v1831
        %v1985 = vpop.f32.mrb[0].mxu0
        %v1986 = vadd.f32 0.0, %v1985
        %v1987 = vpop.f32.mrb[0].mxu0
        %1988 = vmatprep.mubr.f32.mxu0 %v1887
        %1989 = vmatmul.mubr.f32.gmra.mrb[0].mxu0 %v1832
        %v1990 = vpop.f32.mrb[0].mxu0
        %v1991 = vadd.f32 0.0, %v1990
        %v1992 = vpop.f32.mrb[0].mxu0
        %1993 = vdwg.mxu0
        %v1994 = vadd.f32 %v1839, %v1956
        %v1995 = vadd.f32 %v1839, %v1961
        %v1996 = vadd.f32 %v1839, %v1966
        %v1997 = vadd.f32 %v1839, %v1971
        %v1998 = vadd.f32 %v1839, %v1976
        %v1999 = vadd.f32 %v1839, %v1981
        %v2000 = vadd.f32 %v1839, %v1986
        %v2001 = vadd.f32 %v1839, %v1991
        %s2002 = scalar_lea.vmem %s12, 192
        %v2003 = vld [vmem:[%s2002] sm:$0xff]
        %v2004 = vld [vmem:[%s2002 + $0x8] sm:$0xff]
        %v2005 = vld [vmem:[%s2002 + $0x10] sm:$0xff]
        %v2006 = vld [vmem:[%s2002 + $0x18] sm:$0xff]
        %v2007 = vld [vmem:[%s2002 + $0x20] sm:$0xff]
        %v2008 = vld [vmem:[%s2002 + $0x28] sm:$0xff]
        %v2009 = vld [vmem:[%s2002 + $0x30] sm:$0xff]
        %v2010 = vld [vmem:[%s2002 + $0x38] sm:$0xff]
        %v2011 = vld [vmem:[%s2002 + $0x40] sm:$0xff]
        %v2012 = vld [vmem:[%s2002 + $0x48] sm:$0xff]
        %v2013 = vld [vmem:[%s2002 + $0x50] sm:$0xff]
        %v2014 = vld [vmem:[%s2002 + $0x58] sm:$0xff]
        %v2015 = vld [vmem:[%s2002 + $0x60] sm:$0xff]
        %v2016 = vld [vmem:[%s2002 + $0x68] sm:$0xff]
        %v2017 = vld [vmem:[%s2002 + $0x70] sm:$0xff]
        %v2018 = vld [vmem:[%s2002 + $0x78] sm:$0xff]
        %v2019 = vld [vmem:[%s2002 + $0x80] sm:$0xff]
        %v2020 = vld [vmem:[%s2002 + $0x88] sm:$0xff]
        %v2021 = vld [vmem:[%s2002 + $0x90] sm:$0xff]
        %v2022 = vld [vmem:[%s2002 + $0x98] sm:$0xff]
        %v2023 = vld [vmem:[%s2002 + $0xa0] sm:$0xff]
        %v2024 = vld [vmem:[%s2002 + $0xa8] sm:$0xff]
        %v2025 = vld [vmem:[%s2002 + $0xb0] sm:$0xff]
        %v2026 = vld [vmem:[%s2002 + $0xb8] sm:$0xff]
        %v2028 = vsel %vm936, %v1783, 0
        %2030 = vmatprep.subr.mxu0 0.0
        %2031 = vmatpush1.msra.mxu0 %v2003
        %2032 = vmatprep.subr.mxu0 0.0
        %2033 = vmatpush1.msra.mxu0 %v2004
        %2034 = vmatprep.subr.mxu0 0.0
        %2035 = vmatpush1.msra.mxu0 %v2005
        %2036 = vmatprep.subr.mxu0 0.0
        %2037 = vmatpush1.msra.mxu0 %v2006
        %2038 = vmatprep.subr.mxu0 0.0
        %2039 = vmatpush1.msra.mxu0 %v2007
        %2040 = vmatprep.subr.mxu0 0.0
        %2041 = vmatpush1.msra.mxu0 %v2008
        %2042 = vmatprep.subr.mxu0 0.0
        %2043 = vmatpush1.msra.mxu0 %v2009
        %2044 = vmatprep.subr.mxu0 0.0
        %2045 = vmatpush1.msra.mxu0 %v2010
        %2046 = vmatprep.subr.mxu0 0.0
        %2047 = vmatpush1.msra.mxu0 %v2011
        %2048 = vmatprep.subr.mxu0 0.0
        %2049 = vmatpush1.msra.mxu0 %v2012
        %2050 = vmatprep.subr.mxu0 0.0
        %2051 = vmatpush1.msra.mxu0 %v2013
        %2052 = vmatprep.subr.mxu0 0.0
        %2053 = vmatpush1.msra.mxu0 %v2014
        %2054 = vmatprep.subr.mxu0 0.0
        %2055 = vmatpush1.msra.mxu0 %v2015
        %2056 = vmatprep.subr.mxu0 0.0
        %2057 = vmatpush1.msra.mxu0 %v2016
        %2058 = vmatprep.subr.mxu0 0.0
        %2059 = vmatpush1.msra.mxu0 %v2017
        %2060 = vmatprep.subr.mxu0 0.0
        %2061 = vmatpush1.msra.mxu0 %v2018
        %2062 = vmatprep.subr.mxu0 0.0
        %2063 = vmatpush1.msra.mxu0 %v2019
        %2064 = vmatprep.subr.mxu0 0.0
        %2065 = vmatpush1.msra.mxu0 %v2020
        %2066 = vmatprep.subr.mxu0 0.0
        %2067 = vmatpush1.msra.mxu0 %v2021
        %2068 = vmatprep.subr.mxu0 0.0
        %2069 = vmatpush1.msra.mxu0 %v2022
        %2070 = vmatprep.subr.mxu0 0.0
        %2071 = vmatpush1.msra.mxu0 %v2023
        %2072 = vmatprep.subr.mxu0 0.0
        %2073 = vmatpush1.msra.mxu0 %v2024
        %2074 = vmatprep.subr.mxu0 0.0
        %2075 = vmatpush1.msra.mxu0 %v2025
        %2076 = vmatprep.subr.mxu0 0.0
        %2077 = vmatpush1.msra.mxu0 %v2026
        %2078 = vmatprep.subr.mxu0 0.0
        %2079 = vmatpush1.msra.mxu0 0.0
        %2080 = vmatprep.subr.mxu0 0.0
        %2081 = vmatpush1.msra.mxu0 0.0
        %2082 = vmatprep.subr.mxu0 0.0
        %2083 = vmatpush1.msra.mxu0 0.0
        %2084 = vmatprep.subr.mxu0 0.0
        %2085 = vmatpush1.msra.mxu0 0.0
        %2086 = vmatprep.subr.mxu0 0.0
        %2087 = vmatpush1.msra.mxu0 0.0
        %2088 = vmatprep.subr.mxu0 0.0
        %2089 = vmatpush1.msra.mxu0 0.0
        %2090 = vmatprep.subr.mxu0 0.0
        %2091 = vmatpush1.msra.mxu0 0.0
        %2092 = vmatprep.subr.mxu0 0.0
        %2093 = vmatpush1.msra.mxu0 0.0
        %2094 = vmatprep.mubr.f32.mxu0 %v1869
        %2095 = vmatmul.mubr.f32.gmra.mrb[0].mxu0 %v1826
        %v2096 = vpop.f32.mrb[0].mxu0
        %v2097 = vadd.f32 0.0, %v2096
        %v2098 = vpop.f32.mrb[0].mxu0
        %2099 = vmatprep.mubr.f32.mxu0 %v1872
        %2100 = vmatmul.mubr.f32.gmra.mrb[0].mxu0 %v1827
        %v2101 = vpop.f32.mrb[0].mxu0
        %v2102 = vadd.f32 0.0, %v2101
        %v2103 = vpop.f32.mrb[0].mxu0
        %2104 = vmatprep.mubr.f32.mxu0 %v1875
        %2105 = vmatmul.mubr.f32.gmra.mrb[0].mxu0 %v1828
        %v2106 = vpop.f32.mrb[0].mxu0
        %v2107 = vadd.f32 0.0, %v2106
        %v2108 = vpop.f32.mrb[0].mxu0
        %2109 = vmatprep.mubr.f32.mxu0 %v1878
        %2110 = vmatmul.mubr.f32.gmra.mrb[0].mxu0 %v1829
        %v2111 = vpop.f32.mrb[0].mxu0
        %v2112 = vadd.f32 0.0, %v2111
        %v2113 = vpop.f32.mrb[0].mxu0
        %2114 = vmatprep.mubr.f32.mxu0 %v1881
        %2115 = vmatmul.mubr.f32.gmra.mrb[0].mxu0 %v1830
        %v2116 = vpop.f32.mrb[0].mxu0
        %v2117 = vadd.f32 0.0, %v2116
        %v2118 = vpop.f32.mrb[0].mxu0
        %2119 = vmatprep.mubr.f32.mxu0 %v1884
        %2120 = vmatmul.mubr.f32.gmra.mrb[0].mxu0 %v1831
        %v2121 = vpop.f32.mrb[0].mxu0
        %v2122 = vadd.f32 0.0, %v2121
        %v2123 = vpop.f32.mrb[0].mxu0
        %2124 = vmatprep.mubr.f32.mxu0 %v1887
        %2125 = vmatmul.mubr.f32.gmra.mrb[0].mxu0 %v1832
        %v2126 = vpop.f32.mrb[0].mxu0
        %v2127 = vadd.f32 0.0, %v2126
        %v2128 = vpop.f32.mrb[0].mxu0
        %2129 = vmatprep.mubr.f32.mxu0 %v2028
        %2130 = vmatmul.mubr.f32.gmra.mrb[0].mxu0 %v1833
        %v2131 = vpop.f32.mrb[0].mxu0
        %v2132 = vadd.f32 0.0, %v2131
        %v2133 = vpop.f32.mrb[0].mxu0
        %2134 = vdwg.mxu0
        %v2135 = vadd.f32 %v1994, %v2097
        %v2136 = vadd.f32 %v1995, %v2102
        %v2137 = vadd.f32 %v1996, %v2107
        %v2138 = vadd.f32 %v1997, %v2112
        %v2139 = vadd.f32 %v1998, %v2117
        %v2140 = vadd.f32 %v1999, %v2122
        %v2141 = vadd.f32 %v2000, %v2127
        %v2142 = vadd.f32 %v2001, %v2132
        %s2143 = scalar_lea.vmem %s12, 384
        %v2144 = vld [vmem:[%s2143] sm:$0xff]
        %v2145 = vld [vmem:[%s2143 + $0x8] sm:$0xff]
        %v2146 = vld [vmem:[%s2143 + $0x10] sm:$0xff]
        %v2147 = vld [vmem:[%s2143 + $0x18] sm:$0xff]
        %v2148 = vld [vmem:[%s2143 + $0x20] sm:$0xff]
        %v2149 = vld [vmem:[%s2143 + $0x28] sm:$0xff]
        %v2150 = vld [vmem:[%s2143 + $0x30] sm:$0xff]
        %v2151 = vld [vmem:[%s2143 + $0x38] sm:$0xff]
        %v2152 = vld [vmem:[%s2143 + $0x40] sm:$0xff]
        %v2153 = vld [vmem:[%s2143 + $0x48] sm:$0xff]
        %v2154 = vld [vmem:[%s2143 + $0x50] sm:$0xff]
        %v2155 = vld [vmem:[%s2143 + $0x58] sm:$0xff]
        %v2156 = vld [vmem:[%s2143 + $0x60] sm:$0xff]
        %v2157 = vld [vmem:[%s2143 + $0x68] sm:$0xff]
        %v2158 = vld [vmem:[%s2143 + $0x70] sm:$0xff]
        %v2159 = vld [vmem:[%s2143 + $0x78] sm:$0xff]
        %v2160 = vld [vmem:[%s2143 + $0x80] sm:$0xff]
        %v2161 = vld [vmem:[%s2143 + $0x88] sm:$0xff]
        %v2162 = vld [vmem:[%s2143 + $0x90] sm:$0xff]
        %v2163 = vld [vmem:[%s2143 + $0x98] sm:$0xff]
        %v2164 = vld [vmem:[%s2143 + $0xa0] sm:$0xff]
        %v2165 = vld [vmem:[%s2143 + $0xa8] sm:$0xff]
        %v2166 = vld [vmem:[%s2143 + $0xb0] sm:$0xff]
        %v2167 = vld [vmem:[%s2143 + $0xb8] sm:$0xff]
        %v2169 = vsel %vm936, %v1784, 0
        %2171 = vmatprep.subr.mxu0 0.0
        %2172 = vmatpush1.msra.mxu0 %v2144
        %2173 = vmatprep.subr.mxu0 0.0
        %2174 = vmatpush1.msra.mxu0 %v2145
        %2175 = vmatprep.subr.mxu0 0.0
        %2176 = vmatpush1.msra.mxu0 %v2146
        %2177 = vmatprep.subr.mxu0 0.0
        %2178 = vmatpush1.msra.mxu0 %v2147
        %2179 = vmatprep.subr.mxu0 0.0
        %2180 = vmatpush1.msra.mxu0 %v2148
        %2181 = vmatprep.subr.mxu0 0.0
        %2182 = vmatpush1.msra.mxu0 %v2149
        %2183 = vmatprep.subr.mxu0 0.0
        %2184 = vmatpush1.msra.mxu0 %v2150
        %2185 = vmatprep.subr.mxu0 0.0
        %2186 = vmatpush1.msra.mxu0 %v2151
        %2187 = vmatprep.subr.mxu0 0.0
        %2188 = vmatpush1.msra.mxu0 %v2152
        %2189 = vmatprep.subr.mxu0 0.0
        %2190 = vmatpush1.msra.mxu0 %v2153
        %2191 = vmatprep.subr.mxu0 0.0
        %2192 = vmatpush1.msra.mxu0 %v2154
        %2193 = vmatprep.subr.mxu0 0.0
        %2194 = vmatpush1.msra.mxu0 %v2155
        %2195 = vmatprep.subr.mxu0 0.0
        %2196 = vmatpush1.msra.mxu0 %v2156
        %2197 = vmatprep.subr.mxu0 0.0
        %2198 = vmatpush1.msra.mxu0 %v2157
        %2199 = vmatprep.subr.mxu0 0.0
        %2200 = vmatpush1.msra.mxu0 %v2158
        %2201 = vmatprep.subr.mxu0 0.0
        %2202 = vmatpush1.msra.mxu0 %v2159
        %2203 = vmatprep.subr.mxu0 0.0
        %2204 = vmatpush1.msra.mxu0 %v2160
        %2205 = vmatprep.subr.mxu0 0.0
        %2206 = vmatpush1.msra.mxu0 %v2161
        %2207 = vmatprep.subr.mxu0 0.0
        %2208 = vmatpush1.msra.mxu0 %v2162
        %2209 = vmatprep.subr.mxu0 0.0
        %2210 = vmatpush1.msra.mxu0 %v2163
        %2211 = vmatprep.subr.mxu0 0.0
        %2212 = vmatpush1.msra.mxu0 %v2164
        %2213 = vmatprep.subr.mxu0 0.0
        %2214 = vmatpush1.msra.mxu0 %v2165
        %2215 = vmatprep.subr.mxu0 0.0
        %2216 = vmatpush1.msra.mxu0 %v2166
        %2217 = vmatprep.subr.mxu0 0.0
        %2218 = vmatpush1.msra.mxu0 %v2167
        %2219 = vmatprep.subr.mxu0 0.0
        %2220 = vmatpush1.msra.mxu0 0.0
        %2221 = vmatprep.subr.mxu0 0.0
        %2222 = vmatpush1.msra.mxu0 0.0
        %2223 = vmatprep.subr.mxu0 0.0
        %2224 = vmatpush1.msra.mxu0 0.0
        %2225 = vmatprep.subr.mxu0 0.0
        %2226 = vmatpush1.msra.mxu0 0.0
        %2227 = vmatprep.subr.mxu0 0.0
        %2228 = vmatpush1.msra.mxu0 0.0
        %2229 = vmatprep.subr.mxu0 0.0
        %2230 = vmatpush1.msra.mxu0 0.0
        %2231 = vmatprep.subr.mxu0 0.0
        %2232 = vmatpush1.msra.mxu0 0.0
        %2233 = vmatprep.subr.mxu0 0.0
        %2234 = vmatpush1.msra.mxu0 0.0
        %2235 = vmatprep.mubr.f32.mxu0 %v1872
        %2236 = vmatmul.mubr.f32.gmra.mrb[0].mxu0 %v1827
        %v2237 = vpop.f32.mrb[0].mxu0
        %v2238 = vadd.f32 0.0, %v2237
        %v2239 = vpop.f32.mrb[0].mxu0
        %2240 = vmatprep.mubr.f32.mxu0 %v1875
        %2241 = vmatmul.mubr.f32.gmra.mrb[0].mxu0 %v1828
        %v2242 = vpop.f32.mrb[0].mxu0
        %v2243 = vadd.f32 0.0, %v2242
        %v2244 = vpop.f32.mrb[0].mxu0
        %2245 = vmatprep.mubr.f32.mxu0 %v1878
        %2246 = vmatmul.mubr.f32.gmra.mrb[0].mxu0 %v1829
        %v2247 = vpop.f32.mrb[0].mxu0
        %v2248 = vadd.f32 0.0, %v2247
        %v2249 = vpop.f32.mrb[0].mxu0
        %2250 = vmatprep.mubr.f32.mxu0 %v1881
        %2251 = vmatmul.mubr.f32.gmra.mrb[0].mxu0 %v1830
        %v2252 = vpop.f32.mrb[0].mxu0
        %v2253 = vadd.f32 0.0, %v2252
        %v2254 = vpop.f32.mrb[0].mxu0
        %2255 = vmatprep.mubr.f32.mxu0 %v1884
        %2256 = vmatmul.mubr.f32.gmra.mrb[0].mxu0 %v1831
        %v2257 = vpop.f32.mrb[0].mxu0
        %v2258 = vadd.f32 0.0, %v2257
        %v2259 = vpop.f32.mrb[0].mxu0
        %2260 = vmatprep.mubr.f32.mxu0 %v1887
        %2261 = vmatmul.mubr.f32.gmra.mrb[0].mxu0 %v1832
        %v2262 = vpop.f32.mrb[0].mxu0
        %v2263 = vadd.f32 0.0, %v2262
        %v2264 = vpop.f32.mrb[0].mxu0
        %2265 = vmatprep.mubr.f32.mxu0 %v2028
        %2266 = vmatmul.mubr.f32.gmra.mrb[0].mxu0 %v1833
        %v2267 = vpop.f32.mrb[0].mxu0
        %v2268 = vadd.f32 0.0, %v2267
        %v2269 = vpop.f32.mrb[0].mxu0
        %2270 = vmatprep.mubr.f32.mxu0 %v2169
        %2271 = vmatmul.mubr.f32.gmra.mrb[0].mxu0 %v1834
        %v2272 = vpop.f32.mrb[0].mxu0
        %v2273 = vadd.f32 0.0, %v2272
        %v2274 = vpop.f32.mrb[0].mxu0
        %2275 = vdwg.mxu0
        %v2276 = vadd.f32 %v2135, %v2238
        %v2277 = vadd.f32 %v2136, %v2243
        %v2278 = vadd.f32 %v2137, %v2248
        %v2279 = vadd.f32 %v2138, %v2253
        %v2280 = vadd.f32 %v2139, %v2258
        %v2281 = vadd.f32 %v2140, %v2263
        %v2282 = vadd.f32 %v2141, %v2268
        %v2283 = vadd.f32 %v2142, %v2273
        %v2284 = vld [vmem:[%s14] sm:$0xff]
        %v2285 = vld [vmem:[%s14 + $0x8] sm:$0xff]
        %v2286 = vld [vmem:[%s14 + $0x10] sm:$0xff]
        %v2287 = vld [vmem:[%s14 + $0x18] sm:$0xff]
        %v2288 = vld [vmem:[%s15] sm:$0x1]
        %v2290 = vlaneseq
        %v2291 = vshrl.u32 %v2290, 7
        %v2292 = vsub.s32 0, %v2291
        %v2293 = vrot.slane %v2288, %v2292
        %v2296 = vsel %vm548, %v534, 0
        %v2299 = vsel %vm548, %v535, 0
        %v2302 = vsel %vm548, %v536, 0
        %v2305 = vsel %vm548, %v537, 0
        %v2308 = vsel %vm548, %v538, 0
        %v2311 = vsel %vm548, %v539, 0
        %v2314 = vsel %vm548, %v540, 0
        %v2317 = vsel %vm548, %v541, 0
        %2319 = vmatprep.subr.mxu0 0.0
        %2320 = vmatpush1.msra.mxu0 %v2284
        %2321 = vmatprep.subr.mxu0 0.0
        %2322 = vmatpush1.msra.mxu0 %v2285
        %2323 = vmatprep.subr.mxu0 0.0
        %2324 = vmatpush1.msra.mxu0 %v2286
        %2325 = vmatprep.subr.mxu0 0.0
        %2326 = vmatpush1.msra.mxu0 %v2287
        %2327 = vmatprep.subr.mxu0 0.0
        %2328 = vmatpush1.msra.mxu0 0.0
        %2329 = vmatprep.subr.mxu0 0.0
        %2330 = vmatpush1.msra.mxu0 0.0
        %2331 = vmatprep.subr.mxu0 0.0
        %2332 = vmatpush1.msra.mxu0 0.0
        %2333 = vmatprep.subr.mxu0 0.0
        %2334 = vmatpush1.msra.mxu0 0.0
        %2335 = vmatprep.subr.mxu0 0.0
        %2336 = vmatpush1.msra.mxu0 0.0
        %2337 = vmatprep.subr.mxu0 0.0
        %2338 = vmatpush1.msra.mxu0 0.0
        %2339 = vmatprep.subr.mxu0 0.0
        %2340 = vmatpush1.msra.mxu0 0.0
        %2341 = vmatprep.subr.mxu0 0.0
        %2342 = vmatpush1.msra.mxu0 0.0
        %2343 = vmatprep.subr.mxu0 0.0
        %2344 = vmatpush1.msra.mxu0 0.0
        %2345 = vmatprep.subr.mxu0 0.0
        %2346 = vmatpush1.msra.mxu0 0.0
        %2347 = vmatprep.subr.mxu0 0.0
        %2348 = vmatpush1.msra.mxu0 0.0
        %2349 = vmatprep.subr.mxu0 0.0
        %2350 = vmatpush1.msra.mxu0 0.0
        %2351 = vmatprep.subr.mxu0 0.0
        %2352 = vmatpush1.msra.mxu0 0.0
        %2353 = vmatprep.subr.mxu0 0.0
        %2354 = vmatpush1.msra.mxu0 0.0
        %2355 = vmatprep.subr.mxu0 0.0
        %2356 = vmatpush1.msra.mxu0 0.0
        %2357 = vmatprep.subr.mxu0 0.0
        %2358 = vmatpush1.msra.mxu0 0.0
        %2359 = vmatprep.subr.mxu0 0.0
        %2360 = vmatpush1.msra.mxu0 0.0
        %2361 = vmatprep.subr.mxu0 0.0
        %2362 = vmatpush1.msra.mxu0 0.0
        %2363 = vmatprep.subr.mxu0 0.0
        %2364 = vmatpush1.msra.mxu0 0.0
        %2365 = vmatprep.subr.mxu0 0.0
        %2366 = vmatpush1.msra.mxu0 0.0
        %2367 = vmatprep.subr.mxu0 0.0
        %2368 = vmatpush1.msra.mxu0 0.0
        %2369 = vmatprep.subr.mxu0 0.0
        %2370 = vmatpush1.msra.mxu0 0.0
        %2371 = vmatprep.subr.mxu0 0.0
        %2372 = vmatpush1.msra.mxu0 0.0
        %2373 = vmatprep.subr.mxu0 0.0
        %2374 = vmatpush1.msra.mxu0 0.0
        %2375 = vmatprep.subr.mxu0 0.0
        %2376 = vmatpush1.msra.mxu0 0.0
        %2377 = vmatprep.subr.mxu0 0.0
        %2378 = vmatpush1.msra.mxu0 0.0
        %2379 = vmatprep.subr.mxu0 0.0
        %2380 = vmatpush1.msra.mxu0 0.0
        %2381 = vmatprep.subr.mxu0 0.0
        %2382 = vmatpush1.msra.mxu0 0.0
        %2383 = vmatprep.mubr.f32.mxu0 0.0
        %2384 = vmatmul.mubr.f32.gmra.mrb[0].mxu0 %v2296
        %v2385 = vpop.f32.mrb[0].mxu0
        %v2386 = vadd.f32 %v2293, %v2385
        %v2387 = vpop.f32.mrb[0].mxu0
        %2388 = vmatprep.mubr.f32.mxu0 0.0
        %2389 = vmatmul.mubr.f32.gmra.mrb[0].mxu0 %v2299
        %v2390 = vpop.f32.mrb[0].mxu0
        %v2391 = vadd.f32 %v2293, %v2390
        %v2392 = vpop.f32.mrb[0].mxu0
        %2393 = vmatprep.mubr.f32.mxu0 0.0
        %2394 = vmatmul.mubr.f32.gmra.mrb[0].mxu0 %v2302
        %v2395 = vpop.f32.mrb[0].mxu0
        %v2396 = vadd.f32 %v2293, %v2395
        %v2397 = vpop.f32.mrb[0].mxu0
        %2398 = vmatprep.mubr.f32.mxu0 0.0
        %2399 = vmatmul.mubr.f32.gmra.mrb[0].mxu0 %v2305
        %v2400 = vpop.f32.mrb[0].mxu0
        %v2401 = vadd.f32 %v2293, %v2400
        %v2402 = vpop.f32.mrb[0].mxu0
        %2403 = vmatprep.mubr.f32.mxu0 0.0
        %2404 = vmatmul.mubr.f32.gmra.mrb[0].mxu0 %v2308
        %v2405 = vpop.f32.mrb[0].mxu0
        %v2406 = vadd.f32 %v2293, %v2405
        %v2407 = vpop.f32.mrb[0].mxu0
        %2408 = vmatprep.mubr.f32.mxu0 0.0
        %2409 = vmatmul.mubr.f32.gmra.mrb[0].mxu0 %v2311
        %v2410 = vpop.f32.mrb[0].mxu0
        %v2411 = vadd.f32 %v2293, %v2410
        %v2412 = vpop.f32.mrb[0].mxu0
        %2413 = vmatprep.mubr.f32.mxu0 0.0
        %2414 = vmatmul.mubr.f32.gmra.mrb[0].mxu0 %v2314
        %v2415 = vpop.f32.mrb[0].mxu0
        %v2416 = vadd.f32 %v2293, %v2415
        %v2417 = vpop.f32.mrb[0].mxu0
        %2418 = vmatprep.mubr.f32.mxu0 0.0
        %2419 = vmatmul.mubr.f32.gmra.mrb[0].mxu0 %v2317
        %v2420 = vpop.f32.mrb[0].mxu0
        %v2421 = vadd.f32 %v2293, %v2420
        %v2422 = vpop.f32.mrb[0].mxu0
        %2423 = vdwg.mxu0
        %v2424 = vadd.f32 %v2276, %v2386
        %v2425 = vadd.f32 %v2277, %v2391
        %v2426 = vadd.f32 %v2278, %v2396
        %v2427 = vadd.f32 %v2279, %v2401
        %v2428 = vadd.f32 %v2280, %v2406
        %v2429 = vadd.f32 %v2281, %v2411
        %v2430 = vadd.f32 %v2282, %v2416
        %v2431 = vadd.f32 %v2283, %v2421
        %2432 = vst.msk [vmem:[%s525] sm:$0xff] %vm936, %v2424
        %2433 = vst.msk [vmem:[%s525 + $0x8] sm:$0xff] %vm936, %v2425
        %2434 = vst.msk [vmem:[%s525 + $0x10] sm:$0xff] %vm936, %v2426
        %2435 = vst.msk [vmem:[%s525 + $0x18] sm:$0xff] %vm936, %v2427
        %2436 = vst.msk [vmem:[%s525 + $0x20] sm:$0xff] %vm936, %v2428
        %2437 = vst.msk [vmem:[%s525 + $0x28] sm:$0xff] %vm936, %v2429
        %2438 = vst.msk [vmem:[%s525 + $0x30] sm:$0xff] %vm936, %v2430
        %2439 = vst.msk [vmem:[%s525 + $0x38] sm:$0xff] %vm936, %v2431
        %s2440 = sand.u32 %s384, 1
        %s2441 = scalar_lea.sflag [#allocation5], %s2440
        %s2442 = sand.u32 %s384, 1
        %s2443 = smul.addr %s2442, 64
        %s2444 = scalar_lea.vmem [#allocation4], %s2443
        // Predicated region
        $region85: #{tpu_custom_call.1} parent=83 // pred_check
          %p2445 = pneg %p394
        $region86: #{tpu_custom_call.1} parent=83 // pred_check_branch
          %2447 = sbr.rel (%p2445) target = $region88
        $region87: #{tpu_custom_call.1} parent=83 // pred_region
          %s2449 = ssub.s32 1024, 1024
          %2450 = vsyncadd %s2441, %s2449
          %s2451 = smul.addr %s30, 8
          %s2452 = smul.addr %s2451, 128
          %s2453 = scalar_lea.hbm %s16, %s2452
          %s2454 = sshll.u32 %s2444, 4
          %s2455 = int_to_ptr.vmem [resolvable:$true] %s2454
          %2460 = dma.vmem_to_hbm [thread:$0]  %s2455, 1024, %s2453, %s2441, 128, 128, 8
        $region88: #{tpu_custom_call.1} parent=83 // pred_fallthru
          _
      $region84: #{tpu_custom_call.1} parent=5 // pred_fallthru
        _
      %p2461 = scmp.le.s32.totalorder 2, %s25
      // Predicated region
      $region89: #{tpu_custom_call.1} parent=5 // pred_check
        %p2462 = pneg %p2461
      $region90: #{tpu_custom_call.1} parent=5 // pred_check_branch
        %2464 = sbr.rel (%p2462) target = $region92
      $region91: #{tpu_custom_call.1} parent=5 // pred_region
        %s2465 = ssub.s32 %s25, 2
        // Predicated region
        $region93: #{tpu_custom_call.1} parent=91 // pred_check
          %p2466 = pneg %p400
        $region94: #{tpu_custom_call.1} parent=91 // pred_check_branch
          %2468 = sbr.rel (%p2466) target = $region96
        $region95: #{tpu_custom_call.1} parent=91 // pred_region
          %s2469 = sand.u32 %s385, 1
          %s2470 = scalar_lea.sflag [#allocation5], %s2469
          %s2471 = sand.u32 %s385, 1
          %s2472 = smul.addr %s2471, 64
          %s2473 = scalar_lea.vmem [#allocation4], %s2472
          %2474 = dma.done %s2470, 1024
        $region96: #{tpu_custom_call.1} parent=91 // pred_fallthru
          _
      $region92: #{tpu_custom_call.1} parent=5 // pred_fallthru
        _
    $region6: #{tpu_custom_call.1} parent=1 // loop_footer
      %s29 = sadd.s32 1, %s25
    $region7: #{tpu_custom_call.1} parent=1 // loop_footer_branch
      %24 = sbr.rel target = $region3
    $region8: #{tpu_custom_call.1} parent=1 // loop_exit
      _
    %2475 = vsyncpa [#allocation5], 1
    %s2476 = scalar_lea.sflag [#allocation5], 1
    %2477 = vsyncpa %s2476, 1

</llo_original>
